<compile_context>
chip_gen: v5e
topology: v5e:2x2
jax: 0.10.0
libtpu: 0.0.40
codegen_flags: <defaults>
</compile_context>

<pallas_src>
import functools
import math

import jax
import jax.numpy as jnp
from jax.experimental import pallas as pl
from jax.experimental.pallas import tpu as pltpu

LN_EPS = 1e-12          # HF ViT config.layer_norm_eps default
MASK_FILL = -10000.0    # Megatron padding-mask fill value


def _round_up(x, m):
    return ((x + m - 1) // m) * m


# --------------------- Kernel 1: fused LayerNorm + QKV projections ---------------------
def _ln_qkv_kernel(x_ref, g_ref, b_ref, wq_ref, wk_ref, wv_ref,
                   bq_ref, bk_ref, bv_ref, q_ref, k_ref, v_ref, *, eps):
    x = x_ref[...].astype(jnp.float32)                          # (tm, H)
    mu = jnp.mean(x, axis=-1, keepdims=True)
    xc = x - mu
    var = jnp.mean(xc * xc, axis=-1, keepdims=True)
    h = xc * jax.lax.rsqrt(var + eps) * g_ref[...] + b_ref[...]
    hb = h.astype(jnp.bfloat16)
    q = jnp.dot(hb, wq_ref[...], preferred_element_type=jnp.float32) + bq_ref[...]
    k = jnp.dot(hb, wk_ref[...], preferred_element_type=jnp.float32) + bk_ref[...]
    v = jnp.dot(hb, wv_ref[...], preferred_element_type=jnp.float32) + bv_ref[...]
    q_ref[...] = q.astype(q_ref.dtype)
    k_ref[...] = k.astype(k_ref.dtype)
    v_ref[...] = v.astype(v_ref.dtype)


def ln_qkv(x, gamma, beta, wq, wk, wv, bq, bk, bv, *, max_row_tile=256):
    """x: (N, H) -> q, k, v each (N, H) bf16, LayerNorm fused into the projections."""
    N, H = x.shape
    # Row tiling: use the full N as one tile when small (full-dim blocks are always
    # legal); otherwise use 256-row tiles and zero-pad N so the grid divides evenly.
    if N <= max_row_tile:
        tm, n_pad = N, N
    else:
        tm = max_row_tile
        n_pad = _round_up(N, tm)
    xp = x if n_pad == N else jnp.pad(x, ((0, n_pad - N), (0, 0)))

    row = lambda i: (i, 0)
    const = lambda i: (0, 0)
    q, k, v = pl.pallas_call(
        functools.partial(_ln_qkv_kernel, eps=LN_EPS),
        out_shape=[jax.ShapeDtypeStruct((n_pad, H), jnp.bfloat16)] * 3,
        grid=(n_pad // tm,),
        in_specs=[
            pl.BlockSpec((tm, H), row),     # x rows
            pl.BlockSpec((1, H), const),    # gamma
            pl.BlockSpec((1, H), const),    # beta
            pl.BlockSpec((H, H), const),    # W_q  (constant index -> VMEM-resident)
            pl.BlockSpec((H, H), const),    # W_k
            pl.BlockSpec((H, H), const),    # W_v
            pl.BlockSpec((1, H), const),    # b_q
            pl.BlockSpec((1, H), const),    # b_k
            pl.BlockSpec((1, H), const),    # b_v
        ],
        out_specs=[pl.BlockSpec((tm, H), row)] * 3,
        compiler_params=pltpu.CompilerParams(dimension_semantics=("parallel",)),
    )(xp, gamma.reshape(1, H), beta.reshape(1, H), wq, wk, wv,
      bq.reshape(1, H), bk.reshape(1, H), bv.reshape(1, H))
    if n_pad != N:
        q, k, v = q[:N], k[:N], v[:N]
    return q, k, v


# ------------- Kernel 2: attention + output projection + bias (per batch) -------------
def _attn_proj_body(q, k, v, wo, bo, scale, mask=None):
    # q, k, v: (S, NH, D) bf16;  wo: (H, H) bf16;  bo: (1, H) f32;  mask: (S, S) int8/None
    s = jnp.einsum("qhd,khd->hqk", q, k,
                   preferred_element_type=jnp.float32) * scale          # (NH, S, S) f32
    if mask is not None:
        # Megatron padding-mask semantics: masked_fill(score, mask, -10000.0)
        s = jnp.where((mask != 0)[None, :, :], MASK_FILL, s)
    s = s - jnp.max(s, axis=-1, keepdims=True)
    p = jnp.exp(s)
    p = p / jnp.sum(p, axis=-1, keepdims=True)                          # exact softmax
    ctx = jnp.einsum("hqk,khd->qhd", p.astype(v.dtype), v,
                     preferred_element_type=jnp.float32)                # (S, NH, D) f32
    S_, NH_, D_ = ctx.shape
    ctx2 = ctx.reshape(S_, NH_ * D_).astype(jnp.bfloat16)               # (S, H)
    y = jnp.dot(ctx2, wo, preferred_element_type=jnp.float32) + bo      # (S, H) f32
    return y


def _attn_proj_kernel(q_ref, k_ref, v_ref, wo_ref, bo_ref, o_ref, *, scale):
    y = _attn_proj_body(q_ref[...], k_ref[...], v_ref[...], wo_ref[...], bo_ref[...],
                        scale)
    o_ref[...] = y.astype(o_ref.dtype)


def _attn_proj_kernel_masked(m_ref, q_ref, k_ref, v_ref, wo_ref, bo_ref, o_ref, *, scale):
    y = _attn_proj_body(q_ref[...], k_ref[...], v_ref[...], wo_ref[...], bo_ref[...],
                        scale, mask=m_ref[...])
    o_ref[...] = y.astype(o_ref.dtype)


def attention_proj(q4, k4, v4, wo, bo, mask_i8, *, scale, out_dtype):
    """q4/k4/v4: (S, B, NH, D) bf16.  Returns y = attn(q,k,v) @ W_o + b_o as (B, S, H)."""
    S, B, NH, D = q4.shape
    H = NH * D
    qkv_spec = pl.BlockSpec((S, None, NH, D), lambda b: (0, b, 0, 0))   # batch squeezed
    wo_spec = pl.BlockSpec((H, H), lambda b: (0, 0))                    # VMEM-resident
    bo_spec = pl.BlockSpec((1, H), lambda b: (0, 0))
    out_spec = pl.BlockSpec((None, S, H), lambda b: (b, 0, 0))          # lane-dense (S,H)
    out_shape = jax.ShapeDtypeStruct((B, S, H), out_dtype)
    cp = pltpu.CompilerParams(dimension_semantics=("parallel",))
    # TODO(synk): for very large S / NH (e.g. 384px ViT-L) the (NH,S,S) f32 logits press
    # VMEM (notably v7x's 64 MiB); split heads / q-rows onto extra grid axes then.
    if mask_i8 is None:
        return pl.pallas_call(
            functools.partial(_attn_proj_kernel, scale=scale),
            out_shape=out_shape, grid=(B,),
            in_specs=[qkv_spec, qkv_spec, qkv_spec, wo_spec, bo_spec],
            out_specs=out_spec, compiler_params=cp,
        )(q4, k4, v4, wo, bo.reshape(1, H))
    mask_spec = pl.BlockSpec((None, None, S, S), lambda b: (b, 0, 0, 0))
    return pl.pallas_call(
        functools.partial(_attn_proj_kernel_masked, scale=scale),
        out_shape=out_shape, grid=(B,),
        in_specs=[mask_spec, qkv_spec, qkv_spec, qkv_spec, wo_spec, bo_spec],
        out_specs=out_spec, compiler_params=cp,
    )(mask_i8, q4, k4, v4, wo, bo.reshape(1, H))


# ----------------------------------- block forward -------------------------------------
def vit_attention_forward(hidden_states, params, attention_mask=None, *, num_heads):
    # hidden_states: [seq, batch, hidden]; residual stays in its input dtype.
    S, B, H = hidden_states.shape
    NH = num_heads
    D = H // NH
    N = S * B
    x2 = hidden_states.reshape(N, H)

    q, k, v = ln_qkv(x2, params["ln_g"], params["ln_b"],
                     params["w_q"], params["w_k"], params["w_v"],
                     params["b_q"], params["b_k"], params["b_v"])       # (N, H) bf16 each
    q4 = q.reshape(S, B, NH, D)
    k4 = k.reshape(S, B, NH, D)
    v4 = v.reshape(S, B, NH, D)

    if attention_mask is None:
        mask_i8 = None                     # module default mask is all-False -> no fill
    else:
        mask_i8 = jnp.broadcast_to(attention_mask, (B, 1, S, S)).astype(jnp.int8)

    y = attention_proj(q4, k4, v4, params["w_o"], params["b_o"], mask_i8,
                       scale=1.0 / math.sqrt(D),
                       out_dtype=hidden_states.dtype)                   # (B, S, H)

    # Residual add (hidden_dropout_prob = 0 -> identity). XLA fuses the transpose + add
    # into one elementwise pass over HBM.
    return hidden_states + jnp.swapaxes(y, 0, 1)


# --------------------------------------- params -----------------------------------------
def init_params(key, hidden):
    # Q/K/V weights are stored separately in (K, M) layout, bf16 (no per-call transpose).
    # TODO(synk): real Megatron checkpoints pack W_qkv per-head [q|k|v]; convert to this
    # split layout once at load time.
    kq, kk, kv, ko = jax.random.split(key, 4)
    std = 0.02

    def w(k):
        return (std * jax.random.normal(k, (hidden, hidden), jnp.float32)
                ).astype(jnp.bfloat16)

    return {
        "ln_g": jnp.ones((hidden,), jnp.float32),
        "ln_b": jnp.zeros((hidden,), jnp.float32),
        "w_q": w(kq), "w_k": w(kk), "w_v": w(kv), "w_o": w(ko),
        "b_q": jnp.zeros((hidden,), jnp.float32),
        "b_k": jnp.zeros((hidden,), jnp.float32),
        "b_v": jnp.zeros((hidden,), jnp.float32),
        "b_o": jnp.zeros((hidden,), jnp.float32),
    }


# --------------------------------- pure-JAX reference -----------------------------------
def reference_forward(hidden_states, params, attention_mask=None, *, num_heads):
    S, B, H = hidden_states.shape
    NH = num_heads
    D = H // NH
    x = hidden_states.astype(jnp.float32)
    mu = jnp.mean(x, axis=-1, keepdims=True)
    var = jnp.mean((x - mu) ** 2, axis=-1, keepdims=True)
    h = (x - mu) / jnp.sqrt(var + LN_EPS) * params["ln_g"] + params["ln_b"]
    q = (h @ params["w_q"].astype(jnp.float32) + params["b_q"]).reshape(S, B, NH, D)
    k = (h @ params["w_k"].astype(jnp.float32) + params["b_k"]).reshape(S, B, NH, D)
    v = (h @ params["w_v"].astype(jnp.float32) + params["b_v"]).reshape(S, B, NH, D)
    s = jnp.einsum("sbhd,tbhd->bhst", q, k) / math.sqrt(D)
    if attention_mask is not None:
        m = jnp.broadcast_to(attention_mask, (B, 1, S, S))
        s = jnp.where(m, MASK_FILL, s)
    p = jax.nn.softmax(s, axis=-1)
    ctx = jnp.einsum("bhst,tbhd->sbhd", p, v).reshape(S, B, H)
    return ctx @ params["w_o"].astype(jnp.float32) + params["b_o"] + x


if __name__ == "__main__":
    # Small, ViT-consistent shapes: seq=8 patches, batch=2, hidden=32, heads=4.
    S, B, H, NH = 8, 2, 32, 4

    key = jax.random.PRNGKey(0)
    kx, kp = jax.random.split(key)
    hidden_states = jax.random.normal(kx, (S, B, H), jnp.float32)   # [seq, batch, hidden]
    params = init_params(kp, H)

    fwd = jax.jit(functools.partial(vit_attention_forward, num_heads=NH))
    out = jax.block_until_ready(fwd(hidden_states, params))
    assert out.shape == (S, B, H)
    assert bool(jnp.all(jnp.isfinite(out)))

    # Numerics vs a pure-JAX f32 reference (same bf16-rounded weights).
    ref = reference_forward(hidden_states, params, num_heads=NH)
    assert bool(jnp.allclose(out, ref, atol=1e-2, rtol=1e-2))

    # Exercise the masked path with an all-False mask — must match the mask-free path.
    mask = jnp.zeros((1, 1, S, S), dtype=bool)
    out_m = jax.block_until_ready(
        jax.jit(functools.partial(vit_attention_forward, num_heads=NH))(
            hidden_states, params, mask))
    assert bool(jnp.allclose(out, out_m, atol=1e-5))

    # TODO(synk): tp_group / sp_group / Ulysses sequence-parallel collectives are
    # multi-device Megatron features; this kernel implements the single-shard math.
    print("KERNEL_OK")
</pallas_src>

<mosaic_0001>
module attributes {stable_mosaic.version = 11 : i64} {
  func.func @_ln_qkv_kernel(%arg0: i32, %arg1: memref<16x32xf32, #tpu.memory_space<vmem>>, %arg2: memref<1x32xf32, #tpu.memory_space<vmem>>, %arg3: memref<1x32xf32, #tpu.memory_space<vmem>>, %arg4: memref<32x32xbf16, #tpu.memory_space<vmem>>, %arg5: memref<32x32xbf16, #tpu.memory_space<vmem>>, %arg6: memref<32x32xbf16, #tpu.memory_space<vmem>>, %arg7: memref<1x32xf32, #tpu.memory_space<vmem>>, %arg8: memref<1x32xf32, #tpu.memory_space<vmem>>, %arg9: memref<1x32xf32, #tpu.memory_space<vmem>>, %arg10: memref<16x32xbf16, #tpu.memory_space<vmem>>, %arg11: memref<16x32xbf16, #tpu.memory_space<vmem>>, %arg12: memref<16x32xbf16, #tpu.memory_space<vmem>>) attributes {dimension_semantics = [#tpu.dimension_semantics<parallel>], iteration_bounds = array<i64: 1>, scalar_prefetch = 0 : i64, scratch_operands = 0 : i64, tpu.core_type = #tpu.core_type<tc>, window_params = [{transform_indices = @transform_0, window_bounds = array<i64: 16, 32>}, {pipeline_mode = #tpu.pipeline_mode<synchronous>, transform_indices = @transform_1, window_bounds = array<i64: 1, 32>}, {pipeline_mode = #tpu.pipeline_mode<synchronous>, transform_indices = @transform_2, window_bounds = array<i64: 1, 32>}, {pipeline_mode = #tpu.pipeline_mode<synchronous>, transform_indices = @transform_3, window_bounds = array<i64: 32, 32>}, {pipeline_mode = #tpu.pipeline_mode<synchronous>, transform_indices = @transform_4, window_bounds = array<i64: 32, 32>}, {pipeline_mode = #tpu.pipeline_mode<synchronous>, transform_indices = @transform_5, window_bounds = array<i64: 32, 32>}, {pipeline_mode = #tpu.pipeline_mode<synchronous>, transform_indices = @transform_6, window_bounds = array<i64: 1, 32>}, {pipeline_mode = #tpu.pipeline_mode<synchronous>, transform_indices = @transform_7, window_bounds = array<i64: 1, 32>}, {pipeline_mode = #tpu.pipeline_mode<synchronous>, transform_indices = @transform_8, window_bounds = array<i64: 1, 32>}, {transform_indices = @transform_9, window_bounds = array<i64: 16, 32>}, {transform_indices = @transform_10, window_bounds = array<i64: 16, 32>}, {transform_indices = @transform_11, window_bounds = array<i64: 16, 32>}]} {
    %c0 = arith.constant 0 : index
    %c0_0 = arith.constant 0 : index
    %0 = vector.load %arg1[%c0, %c0_0] : memref<16x32xf32, #tpu.memory_space<vmem>>, vector<16x32xf32>
    %cst = arith.constant dense<0.000000e+00> : vector<16xf32>
    %1 = vector.multi_reduction <add>, %0, %cst [1] : vector<16x32xf32> to vector<16xf32>
    %2 = vector.shape_cast %1 : vector<16xf32> to vector<16x1xf32>
    %cst_1 = arith.constant 3.200000e+01 : f32
    %3 = vector.broadcast %cst_1 : f32 to vector<16x1xf32>
    %4 = arith.divf %2, %3 : vector<16x1xf32>
    %5 = vector.broadcast %4 : vector<16x1xf32> to vector<16x32xf32>
    %6 = arith.subf %0, %5 : vector<16x32xf32>
    %7 = arith.mulf %6, %6 : vector<16x32xf32>
    %cst_2 = arith.constant dense<0.000000e+00> : vector<16xf32>
    %8 = vector.multi_reduction <add>, %7, %cst_2 [1] : vector<16x32xf32> to vector<16xf32>
    %9 = vector.shape_cast %8 : vector<16xf32> to vector<16x1xf32>
    %cst_3 = arith.constant 3.200000e+01 : f32
    %10 = vector.broadcast %cst_3 : f32 to vector<16x1xf32>
    %11 = arith.divf %9, %10 : vector<16x1xf32>
    %cst_4 = arith.constant 9.99999996E-13 : f32
    %12 = vector.broadcast %cst_4 : f32 to vector<16x1xf32>
    %13 = arith.addf %11, %12 : vector<16x1xf32>
    %14 = math.rsqrt %13 : vector<16x1xf32>
    %15 = vector.broadcast %14 : vector<16x1xf32> to vector<16x32xf32>
    %16 = arith.mulf %6, %15 : vector<16x32xf32>
    %c0_5 = arith.constant 0 : index
    %c0_6 = arith.constant 0 : index
    %17 = vector.load %arg2[%c0_5, %c0_6] : memref<1x32xf32, #tpu.memory_space<vmem>>, vector<1x32xf32>
    %18 = vector.broadcast %17 : vector<1x32xf32> to vector<16x32xf32>
    %19 = arith.mulf %16, %18 : vector<16x32xf32>
    %c0_7 = arith.constant 0 : index
    %c0_8 = arith.constant 0 : index
    %20 = vector.load %arg3[%c0_7, %c0_8] : memref<1x32xf32, #tpu.memory_space<vmem>>, vector<1x32xf32>
    %21 = vector.broadcast %20 : vector<1x32xf32> to vector<16x32xf32>
    %22 = arith.addf %19, %21 : vector<16x32xf32>
    %23 = arith.truncf %22 : vector<16x32xf32> to vector<16x32xbf16>
    %c0_9 = arith.constant 0 : index
    %c0_10 = arith.constant 0 : index
    %24 = vector.load %arg4[%c0_9, %c0_10] : memref<32x32xbf16, #tpu.memory_space<vmem>>, vector<32x32xbf16>
    %cst_11 = arith.constant dense<0.000000e+00> : vector<16x32xf32>
    %25 = tpu.matmul %23, %24, %cst_11 {dimension_numbers = #tpu.dot_dimension_numbers<[1], [0], [0], [1], [0, 0, 1, 1], [], []>} : vector<16x32xbf16>, vector<32x32xbf16>, vector<16x32xf32> -> vector<16x32xf32>
    %c0_12 = arith.constant 0 : index
    %c0_13 = arith.constant 0 : index
    %26 = vector.load %arg7[%c0_12, %c0_13] : memref<1x32xf32, #tpu.memory_space<vmem>>, vector<1x32xf32>
    %27 = vector.broadcast %26 : vector<1x32xf32> to vector<16x32xf32>
    %28 = arith.addf %25, %27 : vector<16x32xf32>
    %c0_14 = arith.constant 0 : index
    %c0_15 = arith.constant 0 : index
    %29 = vector.load %arg5[%c0_14, %c0_15] : memref<32x32xbf16, #tpu.memory_space<vmem>>, vector<32x32xbf16>
    %cst_16 = arith.constant dense<0.000000e+00> : vector<16x32xf32>
    %30 = tpu.matmul %23, %29, %cst_16 {dimension_numbers = #tpu.dot_dimension_numbers<[1], [0], [0], [1], [0, 0, 1, 1], [], []>} : vector<16x32xbf16>, vector<32x32xbf16>, vector<16x32xf32> -> vector<16x32xf32>
    %c0_17 = arith.constant 0 : index
    %c0_18 = arith.constant 0 : index
    %31 = vector.load %arg8[%c0_17, %c0_18] : memref<1x32xf32, #tpu.memory_space<vmem>>, vector<1x32xf32>
    %32 = vector.broadcast %31 : vector<1x32xf32> to vector<16x32xf32>
    %33 = arith.addf %30, %32 : vector<16x32xf32>
    %c0_19 = arith.constant 0 : index
    %c0_20 = arith.constant 0 : index
    %34 = vector.load %arg6[%c0_19, %c0_20] : memref<32x32xbf16, #tpu.memory_space<vmem>>, vector<32x32xbf16>
    %cst_21 = arith.constant dense<0.000000e+00> : vector<16x32xf32>
    %35 = tpu.matmul %23, %34, %cst_21 {dimension_numbers = #tpu.dot_dimension_numbers<[1], [0], [0], [1], [0, 0, 1, 1], [], []>} : vector<16x32xbf16>, vector<32x32xbf16>, vector<16x32xf32> -> vector<16x32xf32>
    %c0_22 = arith.constant 0 : index
    %c0_23 = arith.constant 0 : index
    %36 = vector.load %arg9[%c0_22, %c0_23] : memref<1x32xf32, #tpu.memory_space<vmem>>, vector<1x32xf32>
    %37 = vector.broadcast %36 : vector<1x32xf32> to vector<16x32xf32>
    %38 = arith.addf %35, %37 : vector<16x32xf32>
    %39 = arith.truncf %28 : vector<16x32xf32> to vector<16x32xbf16>
    %c0_24 = arith.constant 0 : index
    %c0_25 = arith.constant 0 : index
    %40 = vector.load %arg10[%c0_24, %c0_25] : memref<16x32xbf16, #tpu.memory_space<vmem>>, vector<16x32xbf16>
    tpu.vector_store %arg10[%c0_24, %c0_25], %39 {strides = array<i32>} : memref<16x32xbf16, #tpu.memory_space<vmem>>, vector<16x32xbf16>,
    %41 = arith.truncf %33 : vector<16x32xf32> to vector<16x32xbf16>
    %c0_26 = arith.constant 0 : index
    %c0_27 = arith.constant 0 : index
    %42 = vector.load %arg11[%c0_26, %c0_27] : memref<16x32xbf16, #tpu.memory_space<vmem>>, vector<16x32xbf16>
    tpu.vector_store %arg11[%c0_26, %c0_27], %41 {strides = array<i32>} : memref<16x32xbf16, #tpu.memory_space<vmem>>, vector<16x32xbf16>,
    %43 = arith.truncf %38 : vector<16x32xf32> to vector<16x32xbf16>
    %c0_28 = arith.constant 0 : index
    %c0_29 = arith.constant 0 : index
    %44 = vector.load %arg12[%c0_28, %c0_29] : memref<16x32xbf16, #tpu.memory_space<vmem>>, vector<16x32xbf16>
    tpu.vector_store %arg12[%c0_28, %c0_29], %43 {strides = array<i32>} : memref<16x32xbf16, #tpu.memory_space<vmem>>, vector<16x32xbf16>,
    return
  }
  func.func @transform_0(%arg0: i32) -> (i32, i32) {
    %c0_i32 = arith.constant 0 : i32
    %c0_i32_0 = arith.constant 0 : i32
    return %arg0, %c0_i32 : i32, i32
  }
  func.func @transform_1(%arg0: i32) -> (i32, i32) {
    %c0_i32 = arith.constant 0 : i32
    %c0_i32_0 = arith.constant 0 : i32
    %c0_i32_1 = arith.constant 0 : i32
    return %c0_i32, %c0_i32_0 : i32, i32
  }
  func.func @transform_2(%arg0: i32) -> (i32, i32) {
    %c0_i32 = arith.constant 0 : i32
    %c0_i32_0 = arith.constant 0 : i32
    %c0_i32_1 = arith.constant 0 : i32
    return %c0_i32, %c0_i32_0 : i32, i32
  }
  func.func @transform_3(%arg0: i32) -> (i32, i32) {
    %c0_i32 = arith.constant 0 : i32
    %c0_i32_0 = arith.constant 0 : i32
    %c0_i32_1 = arith.constant 0 : i32
    return %c0_i32, %c0_i32_0 : i32, i32
  }
  func.func @transform_4(%arg0: i32) -> (i32, i32) {
    %c0_i32 = arith.constant 0 : i32
    %c0_i32_0 = arith.constant 0 : i32
    %c0_i32_1 = arith.constant 0 : i32
    return %c0_i32, %c0_i32_0 : i32, i32
  }
  func.func @transform_5(%arg0: i32) -> (i32, i32) {
    %c0_i32 = arith.constant 0 : i32
    %c0_i32_0 = arith.constant 0 : i32
    %c0_i32_1 = arith.constant 0 : i32
    return %c0_i32, %c0_i32_0 : i32, i32
  }
  func.func @transform_6(%arg0: i32) -> (i32, i32) {
    %c0_i32 = arith.constant 0 : i32
    %c0_i32_0 = arith.constant 0 : i32
    %c0_i32_1 = arith.constant 0 : i32
    return %c0_i32, %c0_i32_0 : i32, i32
  }
  func.func @transform_7(%arg0: i32) -> (i32, i32) {
    %c0_i32 = arith.constant 0 : i32
    %c0_i32_0 = arith.constant 0 : i32
    %c0_i32_1 = arith.constant 0 : i32
    return %c0_i32, %c0_i32_0 : i32, i32
  }
  func.func @transform_8(%arg0: i32) -> (i32, i32) {
    %c0_i32 = arith.constant 0 : i32
    %c0_i32_0 = arith.constant 0 : i32
    %c0_i32_1 = arith.constant 0 : i32
    return %c0_i32, %c0_i32_0 : i32, i32
  }
  func.func @transform_9(%arg0: i32) -> (i32, i32) {
    %c0_i32 = arith.constant 0 : i32
    %c0_i32_0 = arith.constant 0 : i32
    return %arg0, %c0_i32 : i32, i32
  }
  func.func @transform_10(%arg0: i32) -> (i32, i32) {
    %c0_i32 = arith.constant 0 : i32
    %c0_i32_0 = arith.constant 0 : i32
    return %arg0, %c0_i32 : i32, i32
  }
  func.func @transform_11(%arg0: i32) -> (i32, i32) {
    %c0_i32 = arith.constant 0 : i32
    %c0_i32_0 = arith.constant 0 : i32
    return %arg0, %c0_i32 : i32, i32
  }
}

module attributes {stable_mosaic.version = 11 : i64} {
  func.func @_attn_proj_kernel(%arg0: i32, %arg1: memref<8x1x4x8xbf16, #tpu.memory_space<vmem>>, %arg2: memref<8x1x4x8xbf16, #tpu.memory_space<vmem>>, %arg3: memref<8x1x4x8xbf16, #tpu.memory_space<vmem>>, %arg4: memref<32x32xbf16, #tpu.memory_space<vmem>>, %arg5: memref<1x32xf32, #tpu.memory_space<vmem>>, %arg6: memref<1x8x32xf32, #tpu.memory_space<vmem>>) attributes {dimension_semantics = [#tpu.dimension_semantics<parallel>], iteration_bounds = array<i64: 2>, scalar_prefetch = 0 : i64, scratch_operands = 0 : i64, tpu.core_type = #tpu.core_type<tc>, window_params = [{transform_indices = @transform_0, window_bounds = array<i64: 8, 1, 4, 8>}, {transform_indices = @transform_1, window_bounds = array<i64: 8, 1, 4, 8>}, {transform_indices = @transform_2, window_bounds = array<i64: 8, 1, 4, 8>}, {pipeline_mode = #tpu.pipeline_mode<synchronous>, transform_indices = @transform_3, window_bounds = array<i64: 32, 32>}, {pipeline_mode = #tpu.pipeline_mode<synchronous>, transform_indices = @transform_4, window_bounds = array<i64: 1, 32>}, {transform_indices = @transform_5, window_bounds = array<i64: 1, 8, 32>}]} {
    %c0 = arith.constant 0 : index
    %c0_0 = arith.constant 0 : index
    %c0_1 = arith.constant 0 : index
    %c0_2 = arith.constant 0 : index
    %0 = vector.load %arg1[%c0, %c0_0, %c0_1, %c0_2] : memref<8x1x4x8xbf16, #tpu.memory_space<vmem>>, vector<8x1x4x8xbf16>
    %1 = vector.shape_cast %0 : vector<8x1x4x8xbf16> to vector<8x4x8xbf16>
    %c0_3 = arith.constant 0 : index
    %c0_4 = arith.constant 0 : index
    %c0_5 = arith.constant 0 : index
    %c0_6 = arith.constant 0 : index
    %2 = vector.load %arg2[%c0_3, %c0_4, %c0_5, %c0_6] : memref<8x1x4x8xbf16, #tpu.memory_space<vmem>>, vector<8x1x4x8xbf16>
    %3 = vector.shape_cast %2 : vector<8x1x4x8xbf16> to vector<8x4x8xbf16>
    %c0_7 = arith.constant 0 : index
    %c0_8 = arith.constant 0 : index
    %c0_9 = arith.constant 0 : index
    %c0_10 = arith.constant 0 : index
    %4 = vector.load %arg3[%c0_7, %c0_8, %c0_9, %c0_10] : memref<8x1x4x8xbf16, #tpu.memory_space<vmem>>, vector<8x1x4x8xbf16>
    %5 = vector.shape_cast %4 : vector<8x1x4x8xbf16> to vector<8x4x8xbf16>
    %c0_11 = arith.constant 0 : index
    %c0_12 = arith.constant 0 : index
    %6 = vector.load %arg4[%c0_11, %c0_12] : memref<32x32xbf16, #tpu.memory_space<vmem>>, vector<32x32xbf16>
    %c0_13 = arith.constant 0 : index
    %c0_14 = arith.constant 0 : index
    %7 = vector.load %arg5[%c0_13, %c0_14] : memref<1x32xf32, #tpu.memory_space<vmem>>, vector<1x32xf32>
    "tpu.trace_start"() <{level = 10 : i32, message = "qhd,khd->hqk"}> : () -> ()
    %cst = arith.constant dense<0.000000e+00> : vector<4x8x8xf32>
    %8 = tpu.matmul %1, %3, %cst {dimension_numbers = #tpu.dot_dimension_numbers<[2], [2], [0], [0], [0, 1, 0, 0, 1, 0], [1], [1]>} : vector<8x4x8xbf16>, vector<8x4x8xbf16>, vector<4x8x8xf32> -> vector<4x8x8xf32>
    "tpu.trace_stop"() : () -> ()
    %cst_15 = arith.constant 0.353553385 : f32
    %9 = vector.broadcast %cst_15 : f32 to vector<4x8x8xf32>
    %10 = arith.mulf %8, %9 : vector<4x8x8xf32>
    %cst_16 = arith.constant dense<0xFF800000> : vector<4x8xf32>
    %11 = vector.multi_reduction <maximumf>, %10, %cst_16 [2] : vector<4x8x8xf32> to vector<4x8xf32>
    %12 = vector.shape_cast %11 : vector<4x8xf32> to vector<4x8x1xf32>
    %13 = vector.broadcast %12 : vector<4x8x1xf32> to vector<4x8x8xf32>
    %14 = arith.subf %10, %13 : vector<4x8x8xf32>
    %15 = math.exp %14 : vector<4x8x8xf32>
    %cst_17 = arith.constant dense<0.000000e+00> : vector<4x8xf32>
    %16 = vector.multi_reduction <add>, %15, %cst_17 [2] : vector<4x8x8xf32> to vector<4x8xf32>
    %17 = vector.shape_cast %16 : vector<4x8xf32> to vector<4x8x1xf32>
    %18 = vector.broadcast %17 : vector<4x8x1xf32> to vector<4x8x8xf32>
    %19 = arith.divf %15, %18 : vector<4x8x8xf32>
    %20 = arith.truncf %19 : vector<4x8x8xf32> to vector<4x8x8xbf16>
    "tpu.trace_start"() <{level = 10 : i32, message = "hqk,khd->qhd"}> : () -> ()
    %cst_18 = arith.constant dense<0.000000e+00> : vector<4x8x8xf32>
    %21 = tpu.matmul %5, %20, %cst_18 {dimension_numbers = #tpu.dot_dimension_numbers<[0], [2], [2], [1], [0, 1, 0, 2, 1, 1], [1], [0]>} : vector<8x4x8xbf16>, vector<4x8x8xbf16>, vector<4x8x8xf32> -> vector<4x8x8xf32>
    %22 = tpu.transpose %21, [2, 0, 1] : vector<4x8x8xf32> -> vector<8x4x8xf32>
    "tpu.trace_stop"() : () -> ()
    %23 = vector.shape_cast %22 : vector<8x4x8xf32> to vector<8x32xf32>
    %24 = arith.truncf %23 : vector<8x32xf32> to vector<8x32xbf16>
    %cst_19 = arith.constant dense<0.000000e+00> : vector<8x32xf32>
    %25 = tpu.matmul %24, %6, %cst_19 {dimension_numbers = #tpu.dot_dimension_numbers<[1], [0], [0], [1], [0, 0, 1, 1], [], []>} : vector<8x32xbf16>, vector<32x32xbf16>, vector<8x32xf32> -> vector<8x32xf32>
    %26 = vector.broadcast %7 : vector<1x32xf32> to vector<8x32xf32>
    %27 = arith.addf %25, %26 : vector<8x32xf32>
    %c0_20 = arith.constant 0 : index
    %c0_21 = arith.constant 0 : index
    %c0_22 = arith.constant 0 : index
    %28 = vector.load %arg6[%c0_20, %c0_21, %c0_22] : memref<1x8x32xf32, #tpu.memory_space<vmem>>, vector<1x8x32xf32>
    %29 = vector.shape_cast %28 : vector<1x8x32xf32> to vector<8x32xf32>
    %30 = vector.shape_cast %27 : vector<8x32xf32> to vector<1x8x32xf32>
    tpu.vector_store %arg6[%c0_20, %c0_21, %c0_22], %30 {strides = array<i32>} : memref<1x8x32xf32, #tpu.memory_space<vmem>>, vector<1x8x32xf32>,
    return
  }
  func.func @transform_0(%arg0: i32) -> (i32, i32, i32, i32) {
    %c0_i32 = arith.constant 0 : i32
    %c0_i32_0 = arith.constant 0 : i32
    %c0_i32_1 = arith.constant 0 : i32
    %c0_i32_2 = arith.constant 0 : i32
    return %c0_i32, %arg0, %c0_i32_0, %c0_i32_1 : i32, i32, i32, i32
  }
  func.func @transform_1(%arg0: i32) -> (i32, i32, i32, i32) {
    %c0_i32 = arith.constant 0 : i32
    %c0_i32_0 = arith.constant 0 : i32
    %c0_i32_1 = arith.constant 0 : i32
    %c0_i32_2 = arith.constant 0 : i32
    return %c0_i32, %arg0, %c0_i32_0, %c0_i32_1 : i32, i32, i32, i32
  }
  func.func @transform_2(%arg0: i32) -> (i32, i32, i32, i32) {
    %c0_i32 = arith.constant 0 : i32
    %c0_i32_0 = arith.constant 0 : i32
    %c0_i32_1 = arith.constant 0 : i32
    %c0_i32_2 = arith.constant 0 : i32
    return %c0_i32, %arg0, %c0_i32_0, %c0_i32_1 : i32, i32, i32, i32
  }
  func.func @transform_3(%arg0: i32) -> (i32, i32) {
    %c0_i32 = arith.constant 0 : i32
    %c0_i32_0 = arith.constant 0 : i32
    %c0_i32_1 = arith.constant 0 : i32
    return %c0_i32, %c0_i32_0 : i32, i32
  }
  func.func @transform_4(%arg0: i32) -> (i32, i32) {
    %c0_i32 = arith.constant 0 : i32
    %c0_i32_0 = arith.constant 0 : i32
    %c0_i32_1 = arith.constant 0 : i32
    return %c0_i32, %c0_i32_0 : i32, i32
  }
  func.func @transform_5(%arg0: i32) -> (i32, i32, i32) {
    %c0_i32 = arith.constant 0 : i32
    %c0_i32_0 = arith.constant 0 : i32
    %c0_i32_1 = arith.constant 0 : i32
    return %arg0, %c0_i32, %c0_i32_0 : i32, i32, i32
  }
}

</mosaic_0001>

<llo_original>
// kernel: vit_attention_forward.2
$region0: #{vit_attention_forward.2}
  #allocation0 [shape = 'u32[]', space=smem, size = 0x4, offset = 0x4, fixed_abs, tag = 'smem constant byte address 0x4 - core index']
  #allocation1 [shape = 'u32[72,128]{1,0:T(1,128)}', space=vmem, size = 0x9000, scoped, tag = 'internal scratch']
  %s0 = inlined_call_operand.vmem [shape: f32[16,32], index: 0, kind: input, shape index: {}]
  %s1 = inlined_call_operand.hbm [shape: f32[1,32], index: 1, kind: input, shape index: {}]
  %s2 = inlined_call_operand.hbm [shape: f32[1,32], index: 2, kind: input, shape index: {}]
  %s3 = inlined_call_operand.hbm [shape: bf16[32,32], index: 3, kind: input, shape index: {}]
  %s4 = inlined_call_operand.hbm [shape: bf16[32,32], index: 4, kind: input, shape index: {}]
  %s5 = inlined_call_operand.hbm [shape: bf16[32,32], index: 5, kind: input, shape index: {}]
  %s6 = inlined_call_operand.hbm [shape: f32[1,32], index: 6, kind: input, shape index: {}]
  %s7 = inlined_call_operand.hbm [shape: f32[1,32], index: 7, kind: input, shape index: {}]
  %s8 = inlined_call_operand.hbm [shape: f32[1,32], index: 8, kind: input, shape index: {}]
  %s9 = inlined_call_operand.vmem [shape: bf16[16,32], index: 9, kind: output, shape index: {0}]
  %s10 = inlined_call_operand.vmem [shape: bf16[16,32], index: 10, kind: output, shape index: {1}]
  %s11 = inlined_call_operand.vmem [shape: bf16[16,32], index: 11, kind: output, shape index: {2}]
  %12 = xla_tuple %s9, %s10, %s11
  %s13 = sld [smem:[#allocation0]]
  $region94: #{vit_attention_forward.2} parent=0
    _
  %s15 = ssub.s32 1, %s13
  %s16 = scalar_select 0, %s15, %s13
  $region1: #{vit_attention_forward.2} parent=0
    #allocation2 [shape = 'u8[512]{0}', space=vmem, size = 0x400, scoped, tag = 'input window, operand 1, single buffered']
    #allocation3 [shape = 's32[1]{0}', space=sflag, size = 0x4, scoped, tag = 'scoped memory for vit_attention_forward.2']
    #allocation4 [shape = 'u8[512]{0}', space=vmem, size = 0x400, scoped, tag = 'input window, operand 2, single buffered']
    #allocation5 [shape = 's32[1]{0}', space=sflag, size = 0x4, scoped, tag = 'scoped memory for vit_attention_forward.2']
    #allocation6 [shape = 'u8[8192]{0}', space=vmem, size = 0x2000, scoped, tag = 'input window, operand 3, single buffered']
    #allocation7 [shape = 'u8[8192]{0}', space=vmem, size = 0x2000, scoped, tag = 'input window, operand 4, single buffered']
    #allocation8 [shape = 's32[1]{0}', space=sflag, size = 0x4, scoped, tag = 'scoped memory for vit_attention_forward.2']
    #allocation9 [shape = 'u8[8192]{0}', space=vmem, size = 0x2000, scoped, tag = 'input window, operand 5, single buffered']
    #allocation10 [shape = 'u8[512]{0}', space=vmem, size = 0x400, scoped, tag = 'input window, operand 6, single buffered']
    #allocation11 [shape = 's32[1]{0}', space=sflag, size = 0x4, scoped, tag = 'scoped memory for vit_attention_forward.2']
    #allocation12 [shape = 'u8[512]{0}', space=vmem, size = 0x400, scoped, tag = 'input window, operand 7, single buffered']
    #allocation13 [shape = 'u8[512]{0}', space=vmem, size = 0x400, scoped, tag = 'input window, operand 8, single buffered']
    #allocation14 [shape = 's32[1]{0}', space=sflag, size = 0x4, scoped, tag = 'scoped memory for vit_attention_forward.2']
    %17 = vsyncpa [#allocation3], 0
    %18 = vsyncpa [#allocation5], 0
    %19 = vsyncpa [#allocation8], 0
    %20 = vsyncpa [#allocation11], 0
    %21 = vsyncpa [#allocation14], 0
    // Predicated region
    $region2: #{vit_attention_forward.2} parent=1 // pred_check
      _
    $region3: #{vit_attention_forward.2} parent=1 // pred_check_branch
      %23 = sbr.rel (0) target = $region5
    $region4: #{vit_attention_forward.2} parent=1 // pred_region
      _
    $region5: #{vit_attention_forward.2} parent=1 // pred_fallthru
      _
    // Predicated region
    $region6: #{vit_attention_forward.2} parent=1 // pred_check
      _
    $region7: #{vit_attention_forward.2} parent=1 // pred_check_branch
      %25 = sbr.rel (0) target = $region9
    $region8: #{vit_attention_forward.2} parent=1 // pred_region
      %27 = vsyncadd [#allocation3], 0
      %s29 = sshll.u32 %s1, 4
      %s30 = int_to_ptr.hbm [resolvable:$true] %s29
      %s31 = sshll.u32 [#allocation2], 4
      %s32 = int_to_ptr.vmem [resolvable:$true] %s31
      %34 = dma.hbm_to_vmem [thread:$0]  %s30, 16, %s32, [#allocation3]
    $region9: #{vit_attention_forward.2} parent=1 // pred_fallthru
      _
    // Predicated region
    $region10: #{vit_attention_forward.2} parent=1 // pred_check
      _
    $region11: #{vit_attention_forward.2} parent=1 // pred_check_branch
      %36 = sbr.rel (0) target = $region13
    $region12: #{vit_attention_forward.2} parent=1 // pred_region
      %38 = vsyncadd [#allocation5], 0
      %s40 = sshll.u32 %s2, 4
      %s41 = int_to_ptr.hbm [resolvable:$true] %s40
      %s42 = sshll.u32 [#allocation4], 4
      %s43 = int_to_ptr.vmem [resolvable:$true] %s42
      %45 = dma.hbm_to_vmem [thread:$0]  %s41, 16, %s43, [#allocation5]
    $region13: #{vit_attention_forward.2} parent=1 // pred_fallthru
      _
    // Predicated region
    $region14: #{vit_attention_forward.2} parent=1 // pred_check
      _
    $region15: #{vit_attention_forward.2} parent=1 // pred_check_branch
      %47 = sbr.rel (0) target = $region17
    $region16: #{vit_attention_forward.2} parent=1 // pred_region
      %49 = vsyncadd [#allocation5], 0
      %s50 = sshll.u32 %s3, 4
      %s51 = int_to_ptr.hbm [resolvable:$true] %s50
      %s52 = sshll.u32 [#allocation6], 4
      %s53 = int_to_ptr.vmem [resolvable:$true] %s52
      %58 = dma.hbm_to_vmem [thread:$0]  %s51, 256, %s53, [#allocation5], 64, 64, 4
    $region17: #{vit_attention_forward.2} parent=1 // pred_fallthru
      _
    // Predicated region
    $region18: #{vit_attention_forward.2} parent=1 // pred_check
      _
    $region19: #{vit_attention_forward.2} parent=1 // pred_check_branch
      %60 = sbr.rel (0) target = $region21
    $region20: #{vit_attention_forward.2} parent=1 // pred_region
      %62 = vsyncadd [#allocation8], 0
      %s63 = sshll.u32 %s4, 4
      %s64 = int_to_ptr.hbm [resolvable:$true] %s63
      %s65 = sshll.u32 [#allocation7], 4
      %s66 = int_to_ptr.vmem [resolvable:$true] %s65
      %71 = dma.hbm_to_vmem [thread:$0]  %s64, 256, %s66, [#allocation8], 64, 64, 4
    $region21: #{vit_attention_forward.2} parent=1 // pred_fallthru
      _
    // Predicated region
    $region22: #{vit_attention_forward.2} parent=1 // pred_check
      _
    $region23: #{vit_attention_forward.2} parent=1 // pred_check_branch
      %73 = sbr.rel (0) target = $region25
    $region24: #{vit_attention_forward.2} parent=1 // pred_region
      %75 = vsyncadd [#allocation8], 0
      %s76 = sshll.u32 %s5, 4
      %s77 = int_to_ptr.hbm [resolvable:$true] %s76
      %s78 = sshll.u32 [#allocation9], 4
      %s79 = int_to_ptr.vmem [resolvable:$true] %s78
      %84 = dma.hbm_to_vmem [thread:$0]  %s77, 256, %s79, [#allocation8], 64, 64, 4
    $region25: #{vit_attention_forward.2} parent=1 // pred_fallthru
      _
    // Predicated region
    $region26: #{vit_attention_forward.2} parent=1 // pred_check
      _
    $region27: #{vit_attention_forward.2} parent=1 // pred_check_branch
      %86 = sbr.rel (0) target = $region29
    $region28: #{vit_attention_forward.2} parent=1 // pred_region
      %88 = vsyncadd [#allocation11], 0
      %s90 = sshll.u32 %s6, 4
      %s91 = int_to_ptr.hbm [resolvable:$true] %s90
      %s92 = sshll.u32 [#allocation10], 4
      %s93 = int_to_ptr.vmem [resolvable:$true] %s92
      %95 = dma.hbm_to_vmem [thread:$0]  %s91, 16, %s93, [#allocation11]
    $region29: #{vit_attention_forward.2} parent=1 // pred_fallthru
      _
    // Predicated region
    $region30: #{vit_attention_forward.2} parent=1 // pred_check
      _
    $region31: #{vit_attention_forward.2} parent=1 // pred_check_branch
      %97 = sbr.rel (0) target = $region33
    $region32: #{vit_attention_forward.2} parent=1 // pred_region
      %99 = vsyncadd [#allocation11], 0
      %s101 = sshll.u32 %s7, 4
      %s102 = int_to_ptr.hbm [resolvable:$true] %s101
      %s103 = sshll.u32 [#allocation12], 4
      %s104 = int_to_ptr.vmem [resolvable:$true] %s103
      %106 = dma.hbm_to_vmem [thread:$0]  %s102, 16, %s104, [#allocation11]
    $region33: #{vit_attention_forward.2} parent=1 // pred_fallthru
      _
    // Predicated region
    $region34: #{vit_attention_forward.2} parent=1 // pred_check
      _
    $region35: #{vit_attention_forward.2} parent=1 // pred_check_branch
      %108 = sbr.rel (0) target = $region37
    $region36: #{vit_attention_forward.2} parent=1 // pred_region
      %110 = vsyncadd [#allocation14], 0
      %s112 = sshll.u32 %s8, 4
      %s113 = int_to_ptr.hbm [resolvable:$true] %s112
      %s114 = sshll.u32 [#allocation13], 4
      %s115 = int_to_ptr.vmem [resolvable:$true] %s114
      %117 = dma.hbm_to_vmem [thread:$0]  %s113, 16, %s115, [#allocation14]
    $region37: #{vit_attention_forward.2} parent=1 // pred_fallthru
      _
    // Predicated region
    $region38: #{vit_attention_forward.2} parent=1 // pred_check
      _
    $region39: #{vit_attention_forward.2} parent=1 // pred_check_branch
      %119 = sbr.rel (0) target = $region41
    $region40: #{vit_attention_forward.2} parent=1 // pred_region
      %121 = dma.done [#allocation3], 16
    $region41: #{vit_attention_forward.2} parent=1 // pred_fallthru
      _
    // Predicated region
    $region42: #{vit_attention_forward.2} parent=1 // pred_check
      _
    $region43: #{vit_attention_forward.2} parent=1 // pred_check_branch
      %123 = sbr.rel (0) target = $region45
    $region44: #{vit_attention_forward.2} parent=1 // pred_region
      %125 = dma.done [#allocation5], 16
    $region45: #{vit_attention_forward.2} parent=1 // pred_fallthru
      _
    // Predicated region
    $region46: #{vit_attention_forward.2} parent=1 // pred_check
      _
    $region47: #{vit_attention_forward.2} parent=1 // pred_check_branch
      %127 = sbr.rel (0) target = $region49
    $region48: #{vit_attention_forward.2} parent=1 // pred_region
      %129 = dma.done [#allocation5], 256
    $region49: #{vit_attention_forward.2} parent=1 // pred_fallthru
      _
    // Predicated region
    $region50: #{vit_attention_forward.2} parent=1 // pred_check
      _
    $region51: #{vit_attention_forward.2} parent=1 // pred_check_branch
      %131 = sbr.rel (0) target = $region53
    $region52: #{vit_attention_forward.2} parent=1 // pred_region
      %133 = dma.done [#allocation8], 256
    $region53: #{vit_attention_forward.2} parent=1 // pred_fallthru
      _
    // Predicated region
    $region54: #{vit_attention_forward.2} parent=1 // pred_check
      _
    $region55: #{vit_attention_forward.2} parent=1 // pred_check_branch
      %135 = sbr.rel (0) target = $region57
    $region56: #{vit_attention_forward.2} parent=1 // pred_region
      %137 = dma.done [#allocation8], 256
    $region57: #{vit_attention_forward.2} parent=1 // pred_fallthru
      _
    // Predicated region
    $region58: #{vit_attention_forward.2} parent=1 // pred_check
      _
    $region59: #{vit_attention_forward.2} parent=1 // pred_check_branch
      %139 = sbr.rel (0) target = $region61
    $region60: #{vit_attention_forward.2} parent=1 // pred_region
      %141 = dma.done [#allocation11], 16
    $region61: #{vit_attention_forward.2} parent=1 // pred_fallthru
      _
    // Predicated region
    $region62: #{vit_attention_forward.2} parent=1 // pred_check
      _
    $region63: #{vit_attention_forward.2} parent=1 // pred_check_branch
      %143 = sbr.rel (0) target = $region65
    $region64: #{vit_attention_forward.2} parent=1 // pred_region
      %145 = dma.done [#allocation11], 16
    $region65: #{vit_attention_forward.2} parent=1 // pred_fallthru
      _
    // Predicated region
    $region66: #{vit_attention_forward.2} parent=1 // pred_check
      _
    $region67: #{vit_attention_forward.2} parent=1 // pred_check_branch
      %147 = sbr.rel (0) target = $region69
    $region68: #{vit_attention_forward.2} parent=1 // pred_region
      %149 = dma.done [#allocation14], 16
    $region69: #{vit_attention_forward.2} parent=1 // pred_fallthru
      _
    %v151 = vld [vmem:[%s0] sm:$0xff]
    %v152 = vld [vmem:[%s0 + $0x8] sm:$0xff]
    %vm153 = vcmask 261120
    %v154 = vsel %vm153, %v151, 0.0
    %155 = vadd.xlane.f32.xlu0 %v154
    %v156 = vpop.xlane.xlu0 %155
    %v157 = vsel %vm153, %v152, 0.0
    %158 = vadd.xlane.f32.xlu0 %v157
    %v159 = vpop.xlane.xlu0 %158
    %v160 = vrcp.pop 32.0
    %v161 = vmul.f32 32.0, %v160
    %v162 = vsub.f32 1.0, %v161
    %v163 = vmul.f32 %v160, %v162
    %v164 = vadd.f32 %v160, %v163
    %vm165 = vweird.f32 %v160
    %v166 = vsel %vm165, %v160, %v164
    %v167 = vmul.f32 %v156, %v166
    %v168 = vmul.f32 %v159, %v166
    %v169 = vsub.f32 %v151, %v167
    %v170 = vsub.f32 %v152, %v168
    %v171 = vmul.f32 %v169, %v169
    %v172 = vmul.f32 %v170, %v170
    %v173 = vsel %vm153, %v171, 0.0
    %174 = vadd.xlane.f32.xlu0 %v173
    %v175 = vpop.xlane.xlu0 %174
    %v176 = vsel %vm153, %v172, 0.0
    %177 = vadd.xlane.f32.xlu0 %v176
    %v178 = vpop.xlane.xlu0 %177
    %v179 = vmul.f32 %v175, %v166
    %v180 = vmul.f32 %v178, %v166
    %v181 = vadd.f32 %v179, 1e-12
    %v182 = vadd.f32 %v180, 1e-12
    %v183 = vrsqrt.pop %v181
    %v184 = vmul.f32 %v183, %v181
    %v185 = vmul.f32 %v184, %v183
    %v186 = vmul.f32 0.5, %v185
    %v187 = vsub.f32 1.5, %v186
    %v188 = vmul.f32 %v183, %v187
    %vm189 = vweird.f32 %v181
    %vm190 = vweird.f32 %v183
    %vm191 = vmor %vm189, %vm190
    %v192 = vsel %vm191, %v183, %v188
    %v193 = vrsqrt.pop %v182
    %v194 = vmul.f32 %v193, %v182
    %v195 = vmul.f32 %v194, %v193
    %v196 = vmul.f32 0.5, %v195
    %v197 = vsub.f32 1.5, %v196
    %v198 = vmul.f32 %v193, %v197
    %vm199 = vweird.f32 %v182
    %vm200 = vweird.f32 %v193
    %vm201 = vmor %vm199, %vm200
    %v202 = vsel %vm201, %v193, %v198
    %v203 = vmul.f32 %v169, %v192
    %v204 = vmul.f32 %v170, %v202
    %v205 = vld [vmem:[#allocation2] sm:$0x1]
    %v207 = vperm.slane %v205, 0
    %v209 = vmul.f32 %v203, %v207
    %v210 = vmul.f32 %v204, %v207
    %v211 = vld [vmem:[#allocation4] sm:$0x1]
    %v213 = vperm.slane %v211, 0
    %v215 = vadd.f32 %v209, %v213
    %v216 = vadd.f32 %v210, %v213
    %v217 = vpack.c.bf16 %v216, %v215
    %v218 = vld [vmem:[#allocation6] sm:$0xf]
    %v219 = vld [vmem:[#allocation6 + $0x4] sm:$0xf]
    %v220 = vld [vmem:[#allocation6 + $0x8] sm:$0xf]
    %v221 = vld [vmem:[#allocation6 + $0xc] sm:$0xf]
    %v222 = vld [vmem:[#allocation10] sm:$0x1]
    %v224 = vperm.slane %v222, 0
    %v230 = vunpack.c.l.b16 %v218
    %v231 = vunpack.c.l.b16 %v219
    %v232 = vunpack.c.l.b16 %v220
    %v233 = vunpack.c.l.b16 %v221
    %v234 = vpack.c.b16 %v231, %v230
    %v235 = vpack.c.b16 %v233, %v232
    %v239 = vsel %vm153, %v217, 0
    %241 = vmatpush.bf16.msra.mxu0 0
    %242 = vmatpush.bf16.msra.mxu0 0
    %243 = vmatpush.bf16.msra.mxu0 0
    %244 = vmatpush.bf16.msra.mxu0 0
    %245 = vmatpush.bf16.msra.mxu0 0
    %246 = vmatpush.bf16.msra.mxu0 0
    %247 = vmatpush.bf16.msra.mxu0 %v235
    %248 = vmatpush.bf16.msra.mxu0 %v234
    %249 = vmatmul.bf16.gmra.mxu0 %v239
    %v250 = vpop.f32.mrf.mxu0
    %v251 = vadd.f32 %v224, %v250
    %v252 = vpop.f32.mrf.mxu0
    %v253 = vadd.f32 %v224, %v252
    %254 = vdwg.mxu0
    %v255 = vld [vmem:[#allocation7] sm:$0xf]
    %v256 = vld [vmem:[#allocation7 + $0x4] sm:$0xf]
    %v257 = vld [vmem:[#allocation7 + $0x8] sm:$0xf]
    %v258 = vld [vmem:[#allocation7 + $0xc] sm:$0xf]
    %v259 = vld [vmem:[#allocation12] sm:$0x1]
    %v261 = vperm.slane %v259, 0
    %v267 = vunpack.c.l.b16 %v255
    %v268 = vunpack.c.l.b16 %v256
    %v269 = vunpack.c.l.b16 %v257
    %v270 = vunpack.c.l.b16 %v258
    %v271 = vpack.c.b16 %v268, %v267
    %v272 = vpack.c.b16 %v270, %v269
    %275 = vmatpush.bf16.msra.mxu0 0
    %276 = vmatpush.bf16.msra.mxu0 0
    %277 = vmatpush.bf16.msra.mxu0 0
    %278 = vmatpush.bf16.msra.mxu0 0
    %279 = vmatpush.bf16.msra.mxu0 0
    %280 = vmatpush.bf16.msra.mxu0 0
    %281 = vmatpush.bf16.msra.mxu0 %v272
    %282 = vmatpush.bf16.msra.mxu0 %v271
    %283 = vmatmul.bf16.gmra.mxu0 %v239
    %v284 = vpop.f32.mrf.mxu0
    %v285 = vadd.f32 %v261, %v284
    %v286 = vpop.f32.mrf.mxu0
    %v287 = vadd.f32 %v261, %v286
    %288 = vdwg.mxu0
    %v289 = vld [vmem:[#allocation9] sm:$0xf]
    %v290 = vld [vmem:[#allocation9 + $0x4] sm:$0xf]
    %v291 = vld [vmem:[#allocation9 + $0x8] sm:$0xf]
    %v292 = vld [vmem:[#allocation9 + $0xc] sm:$0xf]
    %v293 = vld [vmem:[#allocation13] sm:$0x1]
    %v295 = vperm.slane %v293, 0
    %v301 = vunpack.c.l.b16 %v289
    %v302 = vunpack.c.l.b16 %v290
    %v303 = vunpack.c.l.b16 %v291
    %v304 = vunpack.c.l.b16 %v292
    %v305 = vpack.c.b16 %v302, %v301
    %v306 = vpack.c.b16 %v304, %v303
    %309 = vmatpush.bf16.msra.mxu0 0
    %310 = vmatpush.bf16.msra.mxu0 0
    %311 = vmatpush.bf16.msra.mxu0 0
    %312 = vmatpush.bf16.msra.mxu0 0
    %313 = vmatpush.bf16.msra.mxu0 0
    %314 = vmatpush.bf16.msra.mxu0 0
    %315 = vmatpush.bf16.msra.mxu0 %v306
    %316 = vmatpush.bf16.msra.mxu0 %v305
    %317 = vmatmul.bf16.gmra.mxu0 %v239
    %v318 = vpop.f32.mrf.mxu0
    %v319 = vadd.f32 %v295, %v318
    %v320 = vpop.f32.mrf.mxu0
    %v321 = vadd.f32 %v295, %v320
    %322 = vdwg.mxu0
    %v323 = vpack.c.bf16 %v251, %v251
    %v324 = vpack.c.bf16 %v253, %v253
    %vm325 = vcmask 257024
    %326 = vst.msk [vmem:[%s9] sm:$0xf] %vm325, %v323
    %327 = vst.msk [vmem:[%s9 + $0x4] sm:$0xf] %vm325, %v324
    %v328 = vpack.c.bf16 %v285, %v285
    %v329 = vpack.c.bf16 %v287, %v287
    %330 = vst.msk [vmem:[%s10] sm:$0xf] %vm325, %v328
    %331 = vst.msk [vmem:[%s10 + $0x4] sm:$0xf] %vm325, %v329
    %v332 = vpack.c.bf16 %v319, %v319
    %v333 = vpack.c.bf16 %v321, %v321
    %334 = vst.msk [vmem:[%s11] sm:$0xf] %vm325, %v332
    %335 = vst.msk [vmem:[%s11 + $0x4] sm:$0xf] %vm325, %v333
    // Predicated region
    $region70: #{vit_attention_forward.2} parent=1 // pred_check
      _
    $region71: #{vit_attention_forward.2} parent=1 // pred_check_branch
      %337 = sbr.rel (0) target = $region73
    $region72: #{vit_attention_forward.2} parent=1 // pred_region
      _
    $region73: #{vit_attention_forward.2} parent=1 // pred_fallthru
      _
    // Predicated region
    $region74: #{vit_attention_forward.2} parent=1 // pred_check
      _
    $region75: #{vit_attention_forward.2} parent=1 // pred_check_branch
      %339 = sbr.rel (0) target = $region77
    $region76: #{vit_attention_forward.2} parent=1 // pred_region
      _
    $region77: #{vit_attention_forward.2} parent=1 // pred_fallthru
      _
    // Predicated region
    $region78: #{vit_attention_forward.2} parent=1 // pred_check
      _
    $region79: #{vit_attention_forward.2} parent=1 // pred_check_branch
      %341 = sbr.rel (0) target = $region81
    $region80: #{vit_attention_forward.2} parent=1 // pred_region
      _
    $region81: #{vit_attention_forward.2} parent=1 // pred_fallthru
      _
    // Predicated region
    $region82: #{vit_attention_forward.2} parent=1 // pred_check
      _
    $region83: #{vit_attention_forward.2} parent=1 // pred_check_branch
      %343 = sbr.rel (0) target = $region85
    $region84: #{vit_attention_forward.2} parent=1 // pred_region
      _
    $region85: #{vit_attention_forward.2} parent=1 // pred_fallthru
      _
    // Predicated region
    $region86: #{vit_attention_forward.2} parent=1 // pred_check
      _
    $region87: #{vit_attention_forward.2} parent=1 // pred_check_branch
      %345 = sbr.rel (0) target = $region89
    $region88: #{vit_attention_forward.2} parent=1 // pred_region
      _
    $region89: #{vit_attention_forward.2} parent=1 // pred_fallthru
      _
    // Predicated region
    $region90: #{vit_attention_forward.2} parent=1 // pred_check
      _
    $region91: #{vit_attention_forward.2} parent=1 // pred_check_branch
      %347 = sbr.rel (0) target = $region93
    $region92: #{vit_attention_forward.2} parent=1 // pred_region
      _
    $region93: #{vit_attention_forward.2} parent=1 // pred_fallthru
      _
    %348 = vsyncpa [#allocation3], 1
    %349 = vsyncpa [#allocation5], 1
    %350 = vsyncpa [#allocation8], 1
    %351 = vsyncpa [#allocation11], 1
    %352 = vsyncpa [#allocation14], 1

// kernel: vit_attention_forward.3
$region0: #{vit_attention_forward.3}
  #allocation0 [shape = 'u32[]', space=smem, size = 0x4, offset = 0x4, fixed_abs, tag = 'smem constant byte address 0x4 - core index']
  #allocation1 [shape = 'u32[72,128]{1,0:T(1,128)}', space=vmem, size = 0x9000, scoped, tag = 'internal scratch']
  %s0 = inlined_call_operand.vmem [shape: bf16[8,2,4,8], index: 0, kind: input, shape index: {}]
  %s1 = inlined_call_operand.vmem [shape: bf16[8,2,4,8], index: 1, kind: input, shape index: {}]
  %s2 = inlined_call_operand.vmem [shape: bf16[8,2,4,8], index: 2, kind: input, shape index: {}]
  %s3 = inlined_call_operand.vmem [shape: bf16[32,32], index: 3, kind: input, shape index: {}]
  %s4 = inlined_call_operand.vmem [shape: f32[1,32], index: 4, kind: input, shape index: {}]
  %s5 = inlined_call_operand.vmem [shape: f32[2,8,32], index: 5, kind: output, shape index: {}]
  %s6 = sld [smem:[#allocation0]]
  $region176: #{vit_attention_forward.3} parent=0
    _
  %s8 = ssub.s32 1, %s6
  %s9 = scalar_select 0, %s8, %s6
  $region1: #{vit_attention_forward.3} parent=0
    #allocation2 [shape = 'u8[16384]{0}', space=vmem, size = 0x4000, scoped, tag = 'input window, operand 0']
    #allocation3 [shape = 'u8[16384]{0}', space=vmem, size = 0x4000, scoped, tag = 'input window, operand 1']
    #allocation4 [shape = 'u8[16384]{0}', space=vmem, size = 0x4000, scoped, tag = 'input window, operand 2']
    loop: start=0, step=1, limit=4
    $region2: #{vit_attention_forward.3} parent=1 // loop_pre_header
      _
    $region3: #{vit_attention_forward.3} parent=1 // loop_header
      %s11 = sphi 0, %s15
      %p12 = scmp.ge.s32.totalorder %s11, 4
      %s21 = sphi 0, %s23
      %s24 = sphi 0, %s21
      %s25 = sphi 0, %s24
      %s41 = sphi 0, %s25
      %s47 = sphi 0, %s49
      %s50 = sphi 0, %s47
      %s51 = sphi 0, %s50
      %s67 = sphi 0, %s51
      %s73 = sphi 0, %s75
      %s76 = sphi 0, %s73
      %s77 = sphi 0, %s76
      %s93 = sphi 0, %s77
      %s97 = sphi 0, %s97
      %s99 = sphi 0, %s97
      %s100 = sphi 0, %s99
      %s114 = sphi 0, %s100
      %s118 = sphi 0, %s118
      %s120 = sphi 0, %s118
      %s121 = sphi 0, %s120
      %s135 = sphi 0, %s121
      %s141 = sphi 0, %s143
      %s144 = sphi 0, %s141
      %s145 = sphi 0, %s144
      %s161 = sphi 0, %s145
    $region4: #{vit_attention_forward.3} parent=1 // loop_header_branch
      %14 = sbr.rel (%p12) target = $region8
    $region5: #{vit_attention_forward.3} parent=1 // loop_body
      %s16 = ssub.s32 %s11, 1
      %s17 = ssub.s32 %s11, 2
      %s18 = sadd.s32 %s11, 1
      %s19 = ssub.s32 %s11, %s18
      %p20 = scmp.eq.s32.totalorder %s19, 0
      %s22 = sadd.s32 %s21, 1
      %s23 = scalar_select %p20, %s21, %s22
      %p26 = pneg %p20
      %p27 = scmp.eq.s32.totalorder %s11, 1
      %p28 = por %p26, %p27
      %p29 = scmp.ne.s32.totalorder %s21, %s24
      %p30 = scmp.eq.s32.totalorder %s11, 0
      %p31 = por %p29, %p30
      %p32 = scmp.ne.s32.totalorder %s21, %s24
      %p33 = scmp.eq.s32.totalorder %s16, 1
      %p34 = por %p32, %p33
      %p35 = scmp.ne.s32.totalorder %s24, %s25
      %p36 = scmp.eq.s32.totalorder %s16, 0
      %p37 = por %p35, %p36
      %p38 = scmp.ne.s32.totalorder %s24, %s25
      %p39 = scmp.eq.s32.totalorder %s17, 1
      %p40 = por %p38, %p39
      %p42 = scmp.ne.s32.totalorder %s25, %s41
      %p43 = scmp.eq.s32.totalorder %s17, 0
      %p44 = por %p42, %p43
      %s45 = ssub.s32 %s11, %s18
      %p46 = scmp.eq.s32.totalorder %s45, 0
      %s48 = sadd.s32 %s47, 1
      %s49 = scalar_select %p46, %s47, %s48
      %p52 = pneg %p46
      %p53 = scmp.eq.s32.totalorder %s11, 1
      %p54 = por %p52, %p53
      %p55 = scmp.ne.s32.totalorder %s47, %s50
      %p56 = scmp.eq.s32.totalorder %s11, 0
      %p57 = por %p55, %p56
      %p58 = scmp.ne.s32.totalorder %s47, %s50
      %p59 = scmp.eq.s32.totalorder %s16, 1
      %p60 = por %p58, %p59
      %p61 = scmp.ne.s32.totalorder %s50, %s51
      %p62 = scmp.eq.s32.totalorder %s16, 0
      %p63 = por %p61, %p62
      %p64 = scmp.ne.s32.totalorder %s50, %s51
      %p65 = scmp.eq.s32.totalorder %s17, 1
      %p66 = por %p64, %p65
      %p68 = scmp.ne.s32.totalorder %s51, %s67
      %p69 = scmp.eq.s32.totalorder %s17, 0
      %p70 = por %p68, %p69
      %s71 = ssub.s32 %s11, %s18
      %p72 = scmp.eq.s32.totalorder %s71, 0
      %s74 = sadd.s32 %s73, 1
      %s75 = scalar_select %p72, %s73, %s74
      %p78 = pneg %p72
      %p79 = scmp.eq.s32.totalorder %s11, 1
      %p80 = por %p78, %p79
      %p81 = scmp.ne.s32.totalorder %s73, %s76
      %p82 = scmp.eq.s32.totalorder %s11, 0
      %p83 = por %p81, %p82
      %p84 = scmp.ne.s32.totalorder %s73, %s76
      %p85 = scmp.eq.s32.totalorder %s16, 1
      %p86 = por %p84, %p85
      %p87 = scmp.ne.s32.totalorder %s76, %s77
      %p88 = scmp.eq.s32.totalorder %s16, 0
      %p89 = por %p87, %p88
      %p90 = scmp.ne.s32.totalorder %s76, %s77
      %p91 = scmp.eq.s32.totalorder %s17, 1
      %p92 = por %p90, %p91
      %p94 = scmp.ne.s32.totalorder %s77, %s93
      %p95 = scmp.eq.s32.totalorder %s17, 0
      %p96 = por %p94, %p95
      %s98 = sadd.s32 %s97, 1
      %p101 = scmp.eq.s32.totalorder %s11, 1
      %p102 = scmp.ne.s32.totalorder %s97, %s99
      %p103 = scmp.eq.s32.totalorder %s11, 0
      %p104 = por %p102, %p103
      %p105 = scmp.ne.s32.totalorder %s97, %s99
      %p106 = scmp.eq.s32.totalorder %s16, 1
      %p107 = por %p105, %p106
      %p108 = scmp.ne.s32.totalorder %s99, %s100
      %p109 = scmp.eq.s32.totalorder %s16, 0
      %p110 = por %p108, %p109
      %p111 = scmp.ne.s32.totalorder %s99, %s100
      %p112 = scmp.eq.s32.totalorder %s17, 1
      %p113 = por %p111, %p112
      %p115 = scmp.ne.s32.totalorder %s100, %s114
      %p116 = scmp.eq.s32.totalorder %s17, 0
      %p117 = por %p115, %p116
      %s119 = sadd.s32 %s118, 1
      %p122 = scmp.eq.s32.totalorder %s11, 1
      %p123 = scmp.ne.s32.totalorder %s118, %s120
      %p124 = scmp.eq.s32.totalorder %s11, 0
      %p125 = por %p123, %p124
      %p126 = scmp.ne.s32.totalorder %s118, %s120
      %p127 = scmp.eq.s32.totalorder %s16, 1
      %p128 = por %p126, %p127
      %p129 = scmp.ne.s32.totalorder %s120, %s121
      %p130 = scmp.eq.s32.totalorder %s16, 0
      %p131 = por %p129, %p130
      %p132 = scmp.ne.s32.totalorder %s120, %s121
      %p133 = scmp.eq.s32.totalorder %s17, 1
      %p134 = por %p132, %p133
      %p136 = scmp.ne.s32.totalorder %s121, %s135
      %p137 = scmp.eq.s32.totalorder %s17, 0
      %p138 = por %p136, %p137
      %s139 = ssub.s32 %s11, %s18
      %p140 = scmp.eq.s32.totalorder %s139, 0
      %s142 = sadd.s32 %s141, 1
      %s143 = scalar_select %p140, %s141, %s142
      %p146 = pneg %p140
      %p147 = scmp.eq.s32.totalorder %s11, 1
      %p148 = por %p146, %p147
      %p149 = scmp.ne.s32.totalorder %s141, %s144
      %p150 = scmp.eq.s32.totalorder %s11, 0
      %p151 = por %p149, %p150
      %p152 = scmp.ne.s32.totalorder %s141, %s144
      %p153 = scmp.eq.s32.totalorder %s16, 1
      %p154 = por %p152, %p153
      %p155 = scmp.ne.s32.totalorder %s144, %s145
      %p156 = scmp.eq.s32.totalorder %s16, 0
      %p157 = por %p155, %p156
      %p158 = scmp.ne.s32.totalorder %s144, %s145
      %p159 = scmp.eq.s32.totalorder %s17, 1
      %p160 = por %p158, %p159
      %p162 = scmp.ne.s32.totalorder %s145, %s161
      %p163 = scmp.eq.s32.totalorder %s17, 0
      %p164 = por %p162, %p163
      %p165 = scmp.le.s32.totalorder 1, %s11
      %p166 = scmp.lt.s32.totalorder %s11, 3
      %p167 = pnand %p165, %p166
      %p168 = pneg %p167
      // Predicated region
      $region9: #{vit_attention_forward.3} parent=5 // pred_check
        _
      $region10: #{vit_attention_forward.3} parent=5 // pred_check_branch
        %170 = sbr.rel (%p167) target = $region12
      $region11: #{vit_attention_forward.3} parent=5 // pred_region
        %s171 = ssub.s32 %s11, 1
        // Predicated region
        $region13: #{vit_attention_forward.3} parent=11 // pred_check
          %p172 = pneg %p110
        $region14: #{vit_attention_forward.3} parent=11 // pred_check_branch
          %174 = sbr.rel (%p172) target = $region16
        $region15: #{vit_attention_forward.3} parent=11 // pred_region
          _
        $region16: #{vit_attention_forward.3} parent=11 // pred_fallthru
          _
        // Predicated region
        $region17: #{vit_attention_forward.3} parent=11 // pred_check
          %p175 = pneg %p131
        $region18: #{vit_attention_forward.3} parent=11 // pred_check_branch
          %177 = sbr.rel (%p175) target = $region20
        $region19: #{vit_attention_forward.3} parent=11 // pred_region
          _
        $region20: #{vit_attention_forward.3} parent=11 // pred_fallthru
          _
      $region12: #{vit_attention_forward.3} parent=5 // pred_fallthru
        _
      %p178 = scmp.lt.s32.totalorder %s11, 2
      // Predicated region
      $region21: #{vit_attention_forward.3} parent=5 // pred_check
        %p179 = pneg %p178
      $region22: #{vit_attention_forward.3} parent=5 // pred_check_branch
        %181 = sbr.rel (%p179) target = $region24
      $region23: #{vit_attention_forward.3} parent=5 // pred_region
        // Predicated region
        $region25: #{vit_attention_forward.3} parent=23 // pred_check
          %p182 = pneg %p31
        $region26: #{vit_attention_forward.3} parent=23 // pred_check_branch
          %184 = sbr.rel (%p182) target = $region28
        $region27: #{vit_attention_forward.3} parent=23 // pred_region
          %s185 = sand.u32 %s21, 1
          %s186 = sand.u32 %s21, 1
          %s187 = smul.addr %s186, 16
          %s188 = scalar_lea.vmem [#allocation2], %s187
          %s189 = smul.addr %s11, 2
          %s190 = scalar_lea.vmem %s0, %s189
          // Predicated region
          $region29: #{vit_attention_forward.3} parent=27 // pred_check
            _
          $region30: #{vit_attention_forward.3} parent=27 // pred_check_branch
            %192 = sbr.rel (0) target = $region32
          $region31: #{vit_attention_forward.3} parent=27 // pred_region
            // Predicated region
            $region33: #{vit_attention_forward.3} parent=31 // pred_check
              _
            $region34: #{vit_attention_forward.3} parent=31 // pred_check_branch
              %194 = sbr.rel target = $region36
            $region35: #{vit_attention_forward.3} parent=31 // pred_region
              // Predicated region
              $region48: #{vit_attention_forward.3} parent=35 // pred_check
                _
              $region49: #{vit_attention_forward.3} parent=35 // pred_check_branch
                %224 = sbr.rel (0) target = $region51
              $region50: #{vit_attention_forward.3} parent=35 // pred_region
                loop: start=0, step=1, limit=1
                $region52: #{vit_attention_forward.3} parent=50 // loop_pre_header
                  _
                $region53: #{vit_attention_forward.3} parent=50 // loop_header
                  %s226 = sphi 0, %s230
                  %p227 = scmp.ge.s32.totalorder %s226, 1
                  %s231 = sphi %s190, %s190
                  %s232 = sphi %s188, %s188
                $region54: #{vit_attention_forward.3} parent=50 // loop_header_branch
                  %229 = sbr.rel (%p227) target = $region58
                $region55: #{vit_attention_forward.3} parent=50 // loop_body
                  _
                $region56: #{vit_attention_forward.3} parent=50 // loop_footer
                  %s230 = sadd.s32 1, %s226
                $region57: #{vit_attention_forward.3} parent=50 // loop_footer_branch
                  %225 = sbr.rel target = $region53
                $region58: #{vit_attention_forward.3} parent=50 // loop_exit
                  _
                %s234 = ssub.s32 4, 1
                loop: start=0, step=1, limit=1
                $region59: #{vit_attention_forward.3} parent=50 // loop_pre_header
                  _
                $region60: #{vit_attention_forward.3} parent=50 // loop_header
                  %s236 = sphi 0, %s240
                  %p237 = scmp.ge.s32.totalorder %s236, 1
                  %s241 = sphi %s190, %s190
                  %s242 = sphi %s188, %s188
                $region61: #{vit_attention_forward.3} parent=50 // loop_header_branch
                  %239 = sbr.rel (%p237) target = $region65
                $region62: #{vit_attention_forward.3} parent=50 // loop_body
                  %v243 = vld [vmem:[%s241] sm:%s234]
                  %244 = vst [vmem:[%s242] sm:%s234] %v243
                  %v245 = vld [vmem:[%s241 + $0x4] sm:%s234]
                  %246 = vst [vmem:[%s242 + $0x2] sm:%s234] %v245
                  %v247 = vld [vmem:[%s241 + $0x8] sm:%s234]
                  %248 = vst [vmem:[%s242 + $0x4] sm:%s234] %v247
                  %v249 = vld [vmem:[%s241 + $0xc] sm:%s234]
                  %250 = vst [vmem:[%s242 + $0x6] sm:%s234] %v249
                  %v251 = vld [vmem:[%s241 + $0x10] sm:%s234]
                  %252 = vst [vmem:[%s242 + $0x8] sm:%s234] %v251
                  %v253 = vld [vmem:[%s241 + $0x14] sm:%s234]
                  %254 = vst [vmem:[%s242 + $0xa] sm:%s234] %v253
                  %v255 = vld [vmem:[%s241 + $0x18] sm:%s234]
                  %256 = vst [vmem:[%s242 + $0xc] sm:%s234] %v255
                  %v257 = vld [vmem:[%s241 + $0x1c] sm:%s234]
                  %258 = vst [vmem:[%s242 + $0xe] sm:%s234] %v257
                $region63: #{vit_attention_forward.3} parent=50 // loop_footer
                  %s240 = sadd.s32 1, %s236
                $region64: #{vit_attention_forward.3} parent=50 // loop_footer_branch
                  %235 = sbr.rel target = $region60
                $region65: #{vit_attention_forward.3} parent=50 // loop_exit
                  _
              $region51: #{vit_attention_forward.3} parent=35 // pred_fallthru
                _
            $region36: #{vit_attention_forward.3} parent=31 // pred_fallthru
              _
            // Predicated region
            $region37: #{vit_attention_forward.3} parent=31 // pred_check
              _
            $region38: #{vit_attention_forward.3} parent=31 // pred_check_branch
              %196 = sbr.rel (0) target = $region40
            $region39: #{vit_attention_forward.3} parent=31 // pred_region
              %s198 = ssub.s32 4, 1
              loop: start=0, step=1, limit=1
              $region41: #{vit_attention_forward.3} parent=39 // loop_pre_header
                _
              $region42: #{vit_attention_forward.3} parent=39 // loop_header
                %s200 = sphi 0, %s204
                %p201 = scmp.ge.s32.totalorder %s200, 1
                %s205 = sphi %s190, %s190
                %s206 = sphi %s188, %s188
              $region43: #{vit_attention_forward.3} parent=39 // loop_header_branch
                %203 = sbr.rel (%p201) target = $region47
              $region44: #{vit_attention_forward.3} parent=39 // loop_body
                %v207 = vld [vmem:[%s205] sm:%s198]
                %208 = vst [vmem:[%s206] sm:%s198] %v207
                %v209 = vld [vmem:[%s205 + $0x4] sm:%s198]
                %210 = vst [vmem:[%s206 + $0x2] sm:%s198] %v209
                %v211 = vld [vmem:[%s205 + $0x8] sm:%s198]
                %212 = vst [vmem:[%s206 + $0x4] sm:%s198] %v211
                %v213 = vld [vmem:[%s205 + $0xc] sm:%s198]
                %214 = vst [vmem:[%s206 + $0x6] sm:%s198] %v213
                %v215 = vld [vmem:[%s205 + $0x10] sm:%s198]
                %216 = vst [vmem:[%s206 + $0x8] sm:%s198] %v215
                %v217 = vld [vmem:[%s205 + $0x14] sm:%s198]
                %218 = vst [vmem:[%s206 + $0xa] sm:%s198] %v217
                %v219 = vld [vmem:[%s205 + $0x18] sm:%s198]
                %220 = vst [vmem:[%s206 + $0xc] sm:%s198] %v219
                %v221 = vld [vmem:[%s205 + $0x1c] sm:%s198]
                %222 = vst [vmem:[%s206 + $0xe] sm:%s198] %v221
              $region45: #{vit_attention_forward.3} parent=39 // loop_footer
                %s204 = sadd.s32 1, %s200
              $region46: #{vit_attention_forward.3} parent=39 // loop_footer_branch
                %199 = sbr.rel target = $region42
              $region47: #{vit_attention_forward.3} parent=39 // loop_exit
                _
            $region40: #{vit_attention_forward.3} parent=31 // pred_fallthru
              _
          $region32: #{vit_attention_forward.3} parent=27 // pred_fallthru
            _
          %259 = vnop
        $region28: #{vit_attention_forward.3} parent=23 // pred_fallthru
          _
        // Predicated region
        $region66: #{vit_attention_forward.3} parent=23 // pred_check
          %p260 = pneg %p57
        $region67: #{vit_attention_forward.3} parent=23 // pred_check_branch
          %262 = sbr.rel (%p260) target = $region69
        $region68: #{vit_attention_forward.3} parent=23 // pred_region
          %s263 = sand.u32 %s47, 1
          %s264 = sand.u32 %s47, 1
          %s265 = smul.addr %s264, 16
          %s266 = scalar_lea.vmem [#allocation3], %s265
          %s267 = smul.addr %s11, 2
          %s268 = scalar_lea.vmem %s1, %s267
          // Predicated region
          $region70: #{vit_attention_forward.3} parent=68 // pred_check
            _
          $region71: #{vit_attention_forward.3} parent=68 // pred_check_branch
            %270 = sbr.rel (0) target = $region73
          $region72: #{vit_attention_forward.3} parent=68 // pred_region
            // Predicated region
            $region74: #{vit_attention_forward.3} parent=72 // pred_check
              _
            $region75: #{vit_attention_forward.3} parent=72 // pred_check_branch
              %272 = sbr.rel target = $region77
            $region76: #{vit_attention_forward.3} parent=72 // pred_region
              // Predicated region
              $region89: #{vit_attention_forward.3} parent=76 // pred_check
                _
              $region90: #{vit_attention_forward.3} parent=76 // pred_check_branch
                %302 = sbr.rel (0) target = $region92
              $region91: #{vit_attention_forward.3} parent=76 // pred_region
                loop: start=0, step=1, limit=1
                $region93: #{vit_attention_forward.3} parent=91 // loop_pre_header
                  _
                $region94: #{vit_attention_forward.3} parent=91 // loop_header
                  %s304 = sphi 0, %s308
                  %p305 = scmp.ge.s32.totalorder %s304, 1
                  %s309 = sphi %s268, %s268
                  %s310 = sphi %s266, %s266
                $region95: #{vit_attention_forward.3} parent=91 // loop_header_branch
                  %307 = sbr.rel (%p305) target = $region99
                $region96: #{vit_attention_forward.3} parent=91 // loop_body
                  _
                $region97: #{vit_attention_forward.3} parent=91 // loop_footer
                  %s308 = sadd.s32 1, %s304
                $region98: #{vit_attention_forward.3} parent=91 // loop_footer_branch
                  %303 = sbr.rel target = $region94
                $region99: #{vit_attention_forward.3} parent=91 // loop_exit
                  _
                %s312 = ssub.s32 4, 1
                loop: start=0, step=1, limit=1
                $region100: #{vit_attention_forward.3} parent=91 // loop_pre_header
                  _
                $region101: #{vit_attention_forward.3} parent=91 // loop_header
                  %s314 = sphi 0, %s318
                  %p315 = scmp.ge.s32.totalorder %s314, 1
                  %s319 = sphi %s268, %s268
                  %s320 = sphi %s266, %s266
                $region102: #{vit_attention_forward.3} parent=91 // loop_header_branch
                  %317 = sbr.rel (%p315) target = $region106
                $region103: #{vit_attention_forward.3} parent=91 // loop_body
                  %v321 = vld [vmem:[%s319] sm:%s312]
                  %322 = vst [vmem:[%s320] sm:%s312] %v321
                  %v323 = vld [vmem:[%s319 + $0x4] sm:%s312]
                  %324 = vst [vmem:[%s320 + $0x2] sm:%s312] %v323
                  %v325 = vld [vmem:[%s319 + $0x8] sm:%s312]
                  %326 = vst [vmem:[%s320 + $0x4] sm:%s312] %v325
                  %v327 = vld [vmem:[%s319 + $0xc] sm:%s312]
                  %328 = vst [vmem:[%s320 + $0x6] sm:%s312] %v327
                  %v329 = vld [vmem:[%s319 + $0x10] sm:%s312]
                  %330 = vst [vmem:[%s320 + $0x8] sm:%s312] %v329
                  %v331 = vld [vmem:[%s319 + $0x14] sm:%s312]
                  %332 = vst [vmem:[%s320 + $0xa] sm:%s312] %v331
                  %v333 = vld [vmem:[%s319 + $0x18] sm:%s312]
                  %334 = vst [vmem:[%s320 + $0xc] sm:%s312] %v333
                  %v335 = vld [vmem:[%s319 + $0x1c] sm:%s312]
                  %336 = vst [vmem:[%s320 + $0xe] sm:%s312] %v335
                $region104: #{vit_attention_forward.3} parent=91 // loop_footer
                  %s318 = sadd.s32 1, %s314
                $region105: #{vit_attention_forward.3} parent=91 // loop_footer_branch
                  %313 = sbr.rel target = $region101
                $region106: #{vit_attention_forward.3} parent=91 // loop_exit
                  _
              $region92: #{vit_attention_forward.3} parent=76 // pred_fallthru
                _
            $region77: #{vit_attention_forward.3} parent=72 // pred_fallthru
              _
            // Predicated region
            $region78: #{vit_attention_forward.3} parent=72 // pred_check
              _
            $region79: #{vit_attention_forward.3} parent=72 // pred_check_branch
              %274 = sbr.rel (0) target = $region81
            $region80: #{vit_attention_forward.3} parent=72 // pred_region
              %s276 = ssub.s32 4, 1
              loop: start=0, step=1, limit=1
              $region82: #{vit_attention_forward.3} parent=80 // loop_pre_header
                _
              $region83: #{vit_attention_forward.3} parent=80 // loop_header
                %s278 = sphi 0, %s282
                %p279 = scmp.ge.s32.totalorder %s278, 1
                %s283 = sphi %s268, %s268
                %s284 = sphi %s266, %s266
              $region84: #{vit_attention_forward.3} parent=80 // loop_header_branch
                %281 = sbr.rel (%p279) target = $region88
              $region85: #{vit_attention_forward.3} parent=80 // loop_body
                %v285 = vld [vmem:[%s283] sm:%s276]
                %286 = vst [vmem:[%s284] sm:%s276] %v285
                %v287 = vld [vmem:[%s283 + $0x4] sm:%s276]
                %288 = vst [vmem:[%s284 + $0x2] sm:%s276] %v287
                %v289 = vld [vmem:[%s283 + $0x8] sm:%s276]
                %290 = vst [vmem:[%s284 + $0x4] sm:%s276] %v289
                %v291 = vld [vmem:[%s283 + $0xc] sm:%s276]
                %292 = vst [vmem:[%s284 + $0x6] sm:%s276] %v291
                %v293 = vld [vmem:[%s283 + $0x10] sm:%s276]
                %294 = vst [vmem:[%s284 + $0x8] sm:%s276] %v293
                %v295 = vld [vmem:[%s283 + $0x14] sm:%s276]
                %296 = vst [vmem:[%s284 + $0xa] sm:%s276] %v295
                %v297 = vld [vmem:[%s283 + $0x18] sm:%s276]
                %298 = vst [vmem:[%s284 + $0xc] sm:%s276] %v297
                %v299 = vld [vmem:[%s283 + $0x1c] sm:%s276]
                %300 = vst [vmem:[%s284 + $0xe] sm:%s276] %v299
              $region86: #{vit_attention_forward.3} parent=80 // loop_footer
                %s282 = sadd.s32 1, %s278
              $region87: #{vit_attention_forward.3} parent=80 // loop_footer_branch
                %277 = sbr.rel target = $region83
              $region88: #{vit_attention_forward.3} parent=80 // loop_exit
                _
            $region81: #{vit_attention_forward.3} parent=72 // pred_fallthru
              _
          $region73: #{vit_attention_forward.3} parent=68 // pred_fallthru
            _
          %337 = vnop
        $region69: #{vit_attention_forward.3} parent=23 // pred_fallthru
          _
        // Predicated region
        $region107: #{vit_attention_forward.3} parent=23 // pred_check
          %p338 = pneg %p83
        $region108: #{vit_attention_forward.3} parent=23 // pred_check_branch
          %340 = sbr.rel (%p338) target = $region110
        $region109: #{vit_attention_forward.3} parent=23 // pred_region
          %s341 = sand.u32 %s73, 1
          %s342 = sand.u32 %s73, 1
          %s343 = smul.addr %s342, 16
          %s344 = scalar_lea.vmem [#allocation4], %s343
          %s345 = smul.addr %s11, 2
          %s346 = scalar_lea.vmem %s2, %s345
          // Predicated region
          $region111: #{vit_attention_forward.3} parent=109 // pred_check
            _
          $region112: #{vit_attention_forward.3} parent=109 // pred_check_branch
            %348 = sbr.rel (0) target = $region114
          $region113: #{vit_attention_forward.3} parent=109 // pred_region
            // Predicated region
            $region115: #{vit_attention_forward.3} parent=113 // pred_check
              _
            $region116: #{vit_attention_forward.3} parent=113 // pred_check_branch
              %350 = sbr.rel target = $region118
            $region117: #{vit_attention_forward.3} parent=113 // pred_region
              // Predicated region
              $region130: #{vit_attention_forward.3} parent=117 // pred_check
                _
              $region131: #{vit_attention_forward.3} parent=117 // pred_check_branch
                %380 = sbr.rel (0) target = $region133
              $region132: #{vit_attention_forward.3} parent=117 // pred_region
                loop: start=0, step=1, limit=1
                $region134: #{vit_attention_forward.3} parent=132 // loop_pre_header
                  _
                $region135: #{vit_attention_forward.3} parent=132 // loop_header
                  %s382 = sphi 0, %s386
                  %p383 = scmp.ge.s32.totalorder %s382, 1
                  %s387 = sphi %s346, %s346
                  %s388 = sphi %s344, %s344
                $region136: #{vit_attention_forward.3} parent=132 // loop_header_branch
                  %385 = sbr.rel (%p383) target = $region140
                $region137: #{vit_attention_forward.3} parent=132 // loop_body
                  _
                $region138: #{vit_attention_forward.3} parent=132 // loop_footer
                  %s386 = sadd.s32 1, %s382
                $region139: #{vit_attention_forward.3} parent=132 // loop_footer_branch
                  %381 = sbr.rel target = $region135
                $region140: #{vit_attention_forward.3} parent=132 // loop_exit
                  _
                %s390 = ssub.s32 4, 1
                loop: start=0, step=1, limit=1
                $region141: #{vit_attention_forward.3} parent=132 // loop_pre_header
                  _
                $region142: #{vit_attention_forward.3} parent=132 // loop_header
                  %s392 = sphi 0, %s396
                  %p393 = scmp.ge.s32.totalorder %s392, 1
                  %s397 = sphi %s346, %s346
                  %s398 = sphi %s344, %s344
                $region143: #{vit_attention_forward.3} parent=132 // loop_header_branch
                  %395 = sbr.rel (%p393) target = $region147
                $region144: #{vit_attention_forward.3} parent=132 // loop_body
                  %v399 = vld [vmem:[%s397] sm:%s390]
                  %400 = vst [vmem:[%s398] sm:%s390] %v399
                  %v401 = vld [vmem:[%s397 + $0x4] sm:%s390]
                  %402 = vst [vmem:[%s398 + $0x2] sm:%s390] %v401
                  %v403 = vld [vmem:[%s397 + $0x8] sm:%s390]
                  %404 = vst [vmem:[%s398 + $0x4] sm:%s390] %v403
                  %v405 = vld [vmem:[%s397 + $0xc] sm:%s390]
                  %406 = vst [vmem:[%s398 + $0x6] sm:%s390] %v405
                  %v407 = vld [vmem:[%s397 + $0x10] sm:%s390]
                  %408 = vst [vmem:[%s398 + $0x8] sm:%s390] %v407
                  %v409 = vld [vmem:[%s397 + $0x14] sm:%s390]
                  %410 = vst [vmem:[%s398 + $0xa] sm:%s390] %v409
                  %v411 = vld [vmem:[%s397 + $0x18] sm:%s390]
                  %412 = vst [vmem:[%s398 + $0xc] sm:%s390] %v411
                  %v413 = vld [vmem:[%s397 + $0x1c] sm:%s390]
                  %414 = vst [vmem:[%s398 + $0xe] sm:%s390] %v413
                $region145: #{vit_attention_forward.3} parent=132 // loop_footer
                  %s396 = sadd.s32 1, %s392
                $region146: #{vit_attention_forward.3} parent=132 // loop_footer_branch
                  %391 = sbr.rel target = $region142
                $region147: #{vit_attention_forward.3} parent=132 // loop_exit
                  _
              $region133: #{vit_attention_forward.3} parent=117 // pred_fallthru
                _
            $region118: #{vit_attention_forward.3} parent=113 // pred_fallthru
              _
            // Predicated region
            $region119: #{vit_attention_forward.3} parent=113 // pred_check
              _
            $region120: #{vit_attention_forward.3} parent=113 // pred_check_branch
              %352 = sbr.rel (0) target = $region122
            $region121: #{vit_attention_forward.3} parent=113 // pred_region
              %s354 = ssub.s32 4, 1
              loop: start=0, step=1, limit=1
              $region123: #{vit_attention_forward.3} parent=121 // loop_pre_header
                _
              $region124: #{vit_attention_forward.3} parent=121 // loop_header
                %s356 = sphi 0, %s360
                %p357 = scmp.ge.s32.totalorder %s356, 1
                %s361 = sphi %s346, %s346
                %s362 = sphi %s344, %s344
              $region125: #{vit_attention_forward.3} parent=121 // loop_header_branch
                %359 = sbr.rel (%p357) target = $region129
              $region126: #{vit_attention_forward.3} parent=121 // loop_body
                %v363 = vld [vmem:[%s361] sm:%s354]
                %364 = vst [vmem:[%s362] sm:%s354] %v363
                %v365 = vld [vmem:[%s361 + $0x4] sm:%s354]
                %366 = vst [vmem:[%s362 + $0x2] sm:%s354] %v365
                %v367 = vld [vmem:[%s361 + $0x8] sm:%s354]
                %368 = vst [vmem:[%s362 + $0x4] sm:%s354] %v367
                %v369 = vld [vmem:[%s361 + $0xc] sm:%s354]
                %370 = vst [vmem:[%s362 + $0x6] sm:%s354] %v369
                %v371 = vld [vmem:[%s361 + $0x10] sm:%s354]
                %372 = vst [vmem:[%s362 + $0x8] sm:%s354] %v371
                %v373 = vld [vmem:[%s361 + $0x14] sm:%s354]
                %374 = vst [vmem:[%s362 + $0xa] sm:%s354] %v373
                %v375 = vld [vmem:[%s361 + $0x18] sm:%s354]
                %376 = vst [vmem:[%s362 + $0xc] sm:%s354] %v375
                %v377 = vld [vmem:[%s361 + $0x1c] sm:%s354]
                %378 = vst [vmem:[%s362 + $0xe] sm:%s354] %v377
              $region127: #{vit_attention_forward.3} parent=121 // loop_footer
                %s360 = sadd.s32 1, %s356
              $region128: #{vit_attention_forward.3} parent=121 // loop_footer_branch
                %355 = sbr.rel target = $region124
              $region129: #{vit_attention_forward.3} parent=121 // loop_exit
                _
            $region122: #{vit_attention_forward.3} parent=113 // pred_fallthru
              _
          $region114: #{vit_attention_forward.3} parent=109 // pred_fallthru
            _
          %415 = vnop
        $region110: #{vit_attention_forward.3} parent=23 // pred_fallthru
          _
      $region24: #{vit_attention_forward.3} parent=5 // pred_fallthru
        _
      %p416 = scmp.le.s32.totalorder 1, %s11
      %p417 = scmp.lt.s32.totalorder %s11, 3
      %p418 = pnand %p416, %p417
      %p419 = pneg %p418
      // Predicated region
      $region148: #{vit_attention_forward.3} parent=5 // pred_check
        _
      $region149: #{vit_attention_forward.3} parent=5 // pred_check_branch
        %421 = sbr.rel (%p418) target = $region151
      $region150: #{vit_attention_forward.3} parent=5 // pred_region
        %s422 = ssub.s32 %s11, 1
        %s423 = sand.u32 %s24, 1
        %s424 = sand.u32 %s24, 1
        %s425 = smul.addr %s424, 16
        %s426 = scalar_lea.vmem [#allocation2], %s425
        // Predicated region
        $region152: #{vit_attention_forward.3} parent=150 // pred_check
          %p427 = pneg %p37
        $region153: #{vit_attention_forward.3} parent=150 // pred_check_branch
          %429 = sbr.rel (%p427) target = $region155
        $region154: #{vit_attention_forward.3} parent=150 // pred_region
          _
        $region155: #{vit_attention_forward.3} parent=150 // pred_fallthru
          _
        %s430 = sand.u32 %s50, 1
        %s431 = sand.u32 %s50, 1
        %s432 = smul.addr %s431, 16
        %s433 = scalar_lea.vmem [#allocation3], %s432
        // Predicated region
        $region156: #{vit_attention_forward.3} parent=150 // pred_check
          %p434 = pneg %p63
        $region157: #{vit_attention_forward.3} parent=150 // pred_check_branch
          %436 = sbr.rel (%p434) target = $region159
        $region158: #{vit_attention_forward.3} parent=150 // pred_region
          _
        $region159: #{vit_attention_forward.3} parent=150 // pred_fallthru
          _
        %s437 = sand.u32 %s76, 1
        %s438 = sand.u32 %s76, 1
        %s439 = smul.addr %s438, 16
        %s440 = scalar_lea.vmem [#allocation4], %s439
        // Predicated region
        $region160: #{vit_attention_forward.3} parent=150 // pred_check
          %p441 = pneg %p89
        $region161: #{vit_attention_forward.3} parent=150 // pred_check_branch
          %443 = sbr.rel (%p441) target = $region163
        $region162: #{vit_attention_forward.3} parent=150 // pred_region
          _
        $region163: #{vit_attention_forward.3} parent=150 // pred_fallthru
          _
        %s444 = sand.u32 %s24, 1
        %s445 = sand.u32 %s24, 1
        %s446 = smul.addr %s445, 16
        %s447 = scalar_lea.vmem [#allocation2], %s446
        %p448 = pneg %p37
        %p449 = pneg %p34
        %s450 = sand.u32 %s50, 1
        %s451 = sand.u32 %s50, 1
        %s452 = smul.addr %s451, 16
        %s453 = scalar_lea.vmem [#allocation3], %s452
        %p454 = pneg %p63
        %p455 = pneg %p60
        %s456 = sand.u32 %s76, 1
        %s457 = sand.u32 %s76, 1
        %s458 = smul.addr %s457, 16
        %s459 = scalar_lea.vmem [#allocation4], %s458
        %p460 = pneg %p89
        %p461 = pneg %p86
        %p462 = pneg %p110
        %p463 = pneg %p107
        %p464 = pneg %p131
        %p465 = pneg %p128
        %p466 = pneg %p157
        %p467 = pneg %p154
        %p468 = scmp.lt.s32.totalorder %s16, 1
        %s469 = scalar_select %p468, %s16, 1
        %s470 = smul.addr %s469, 8
        %s471 = scalar_lea.vmem %s5, %s470
        %p472 = scmp.lt.s32.totalorder %s16, 1
        %s473 = scalar_select %p472, %s16, 1
        %s474 = smul.addr %s473, 8
        %s475 = scalar_lea.vmem %s5, %s474
        %v477 = vld [vmem:[%s426] sm:$0x3]
        %v478 = vld [vmem:[%s426 + $0x2] sm:$0x3]
        %v479 = vld [vmem:[%s426 + $0x4] sm:$0x3]
        %v480 = vld [vmem:[%s426 + $0x6] sm:$0x3]
        %v481 = vld [vmem:[%s426 + $0x8] sm:$0x3]
        %v482 = vld [vmem:[%s426 + $0xa] sm:$0x3]
        %v483 = vld [vmem:[%s426 + $0xc] sm:$0x3]
        %v484 = vld [vmem:[%s426 + $0xe] sm:$0x3]
        %v485 = vld [vmem:[%s433] sm:$0x3]
        %v486 = vld [vmem:[%s433 + $0x2] sm:$0x3]
        %v487 = vld [vmem:[%s433 + $0x4] sm:$0x3]
        %v488 = vld [vmem:[%s433 + $0x6] sm:$0x3]
        %v489 = vld [vmem:[%s433 + $0x8] sm:$0x3]
        %v490 = vld [vmem:[%s433 + $0xa] sm:$0x3]
        %v491 = vld [vmem:[%s433 + $0xc] sm:$0x3]
        %v492 = vld [vmem:[%s433 + $0xe] sm:$0x3]
        %v493 = vld [vmem:[%s440] sm:$0x3]
        %v494 = vld [vmem:[%s440 + $0x2] sm:$0x3]
        %v495 = vld [vmem:[%s440 + $0x4] sm:$0x3]
        %v496 = vld [vmem:[%s440 + $0x6] sm:$0x3]
        %v497 = vld [vmem:[%s440 + $0x8] sm:$0x3]
        %v498 = vld [vmem:[%s440 + $0xa] sm:$0x3]
        %v499 = vld [vmem:[%s440 + $0xc] sm:$0x3]
        %v500 = vld [vmem:[%s440 + $0xe] sm:$0x3]
        %v501 = vld [vmem:[%s3] sm:$0xf]
        %v502 = vld [vmem:[%s3 + $0x4] sm:$0xf]
        %v503 = vld [vmem:[%s3 + $0x8] sm:$0xf]
        %v504 = vld [vmem:[%s3 + $0xc] sm:$0xf]
        %v505 = vld [vmem:[%s4] sm:$0x1]
        %v506 = vrot.slane %v479, 4
        %vm507 = vcmask 1047556
        %v508 = vsel %vm507, %v506, %v477
        %v510 = vunpack.c.l.s4 1934713408
        %v511 = vunpack.c.0.s8 %v510
        %v512 = vperm.slane %v508, %v511
        %v513 = vrot.slane %v512, 4
        %v514 = vsel %vm507, 0, %v513
        %v515 = vrot.slane %v480, 4
        %v516 = vsel %vm507, %v515, %v478
        %v518 = vunpack.c.l.s4 1934713408
        %v519 = vunpack.c.0.s8 %v518
        %v520 = vperm.slane %v516, %v519
        %v521 = vrot.slane %v520, 4
        %v522 = vsel %vm507, 0, %v521
        %v523 = vrot.slane %v483, 4
        %v524 = vsel %vm507, %v523, %v481
        %v526 = vunpack.c.l.s4 1934713408
        %v527 = vunpack.c.0.s8 %v526
        %v528 = vperm.slane %v524, %v527
        %v529 = vrot.slane %v528, 4
        %v530 = vsel %vm507, 0, %v529
        %v531 = vrot.slane %v484, 4
        %v532 = vsel %vm507, %v531, %v482
        %v534 = vunpack.c.l.s4 1934713408
        %v535 = vunpack.c.0.s8 %v534
        %v536 = vperm.slane %v532, %v535
        %v537 = vrot.slane %v536, 4
        %v538 = vsel %vm507, 0, %v537
        %v541 = vpack.i.b16 %v520, %v512
        %v542 = vshrl.u32 %v512, 16
        %v543 = vshrl.u32 %v520, 16
        %v544 = vpack.i.b16 %v543, %v542
        %v547 = vpack.i.b16 %v522, %v514
        %v548 = vshrl.u32 %v514, 16
        %v549 = vshrl.u32 %v522, 16
        %v550 = vpack.i.b16 %v549, %v548
        %v553 = vpack.i.b16 %v536, %v528
        %v554 = vshrl.u32 %v528, 16
        %v555 = vshrl.u32 %v536, 16
        %v556 = vpack.i.b16 %v555, %v554
        %v559 = vpack.i.b16 %v538, %v530
        %v560 = vshrl.u32 %v530, 16
        %v561 = vshrl.u32 %v538, 16
        %v562 = vpack.i.b16 %v561, %v560
        %563 = vxpose.xlu0.c.b16.start [1/8] %v485, 128
        %564 = vxpose.xlu0.c.b16.cont [2/8] 0, 128
        %565 = vxpose.xlu0.c.b16.cont [3/8] 0, 128
        %566 = vxpose.xlu0.c.b16.cont [4/8] 0, 128
        %567 = vxpose.xlu0.c.b16.cont [5/8] 0, 128
        %568 = vxpose.xlu0.c.b16.cont [6/8] 0, 128
        %569 = vxpose.xlu0.c.b16.cont [7/8] 0, 128
        %570 = vxpose.xlu0.c.b16.end [8/8] 0, 128
        %v571 = vpop.trf.xlu0
        %v572 = vpop.trf.xlu0
        %v573 = vpop.trf.xlu0
        %v574 = vpop.trf.xlu0
        %v575 = vpop.trf.xlu0
        %v576 = vpop.trf.xlu0
        %v577 = vpop.trf.xlu0
        %v578 = vpop.trf.xlu0
        %579 = vxpose.xlu0.c.b16.start [1/8] %v486, 128
        %580 = vxpose.xlu0.c.b16.cont [2/8] 0, 128
        %581 = vxpose.xlu0.c.b16.cont [3/8] 0, 128
        %582 = vxpose.xlu0.c.b16.cont [4/8] 0, 128
        %583 = vxpose.xlu0.c.b16.cont [5/8] 0, 128
        %584 = vxpose.xlu0.c.b16.cont [6/8] 0, 128
        %585 = vxpose.xlu0.c.b16.cont [7/8] 0, 128
        %586 = vxpose.xlu0.c.b16.end [8/8] 0, 128
        %v587 = vpop.trf.xlu0
        %v588 = vpop.trf.xlu0
        %v589 = vpop.trf.xlu0
        %v590 = vpop.trf.xlu0
        %v591 = vpop.trf.xlu0
        %v592 = vpop.trf.xlu0
        %v593 = vpop.trf.xlu0
        %v594 = vpop.trf.xlu0
        %595 = vxpose.xlu0.c.b16.start [1/8] %v487, 128
        %596 = vxpose.xlu0.c.b16.cont [2/8] 0, 128
        %597 = vxpose.xlu0.c.b16.cont [3/8] 0, 128
        %598 = vxpose.xlu0.c.b16.cont [4/8] 0, 128
        %599 = vxpose.xlu0.c.b16.cont [5/8] 0, 128
        %600 = vxpose.xlu0.c.b16.cont [6/8] 0, 128
        %601 = vxpose.xlu0.c.b16.cont [7/8] 0, 128
        %602 = vxpose.xlu0.c.b16.end [8/8] 0, 128
        %v603 = vpop.trf.xlu0
        %v604 = vpop.trf.xlu0
        %v605 = vpop.trf.xlu0
        %v606 = vpop.trf.xlu0
        %v607 = vpop.trf.xlu0
        %v608 = vpop.trf.xlu0
        %v609 = vpop.trf.xlu0
        %v610 = vpop.trf.xlu0
        %611 = vxpose.xlu0.c.b16.start [1/8] %v488, 128
        %612 = vxpose.xlu0.c.b16.cont [2/8] 0, 128
        %613 = vxpose.xlu0.c.b16.cont [3/8] 0, 128
        %614 = vxpose.xlu0.c.b16.cont [4/8] 0, 128
        %615 = vxpose.xlu0.c.b16.cont [5/8] 0, 128
        %616 = vxpose.xlu0.c.b16.cont [6/8] 0, 128
        %617 = vxpose.xlu0.c.b16.cont [7/8] 0, 128
        %618 = vxpose.xlu0.c.b16.end [8/8] 0, 128
        %v619 = vpop.trf.xlu0
        %v620 = vpop.trf.xlu0
        %v621 = vpop.trf.xlu0
        %v622 = vpop.trf.xlu0
        %v623 = vpop.trf.xlu0
        %v624 = vpop.trf.xlu0
        %v625 = vpop.trf.xlu0
        %v626 = vpop.trf.xlu0
        %627 = vxpose.xlu0.c.b16.start [1/8] %v489, 128
        %628 = vxpose.xlu0.c.b16.cont [2/8] 0, 128
        %629 = vxpose.xlu0.c.b16.cont [3/8] 0, 128
        %630 = vxpose.xlu0.c.b16.cont [4/8] 0, 128
        %631 = vxpose.xlu0.c.b16.cont [5/8] 0, 128
        %632 = vxpose.xlu0.c.b16.cont [6/8] 0, 128
        %633 = vxpose.xlu0.c.b16.cont [7/8] 0, 128
        %634 = vxpose.xlu0.c.b16.end [8/8] 0, 128
        %v635 = vpop.trf.xlu0
        %v636 = vpop.trf.xlu0
        %v637 = vpop.trf.xlu0
        %v638 = vpop.trf.xlu0
        %v639 = vpop.trf.xlu0
        %v640 = vpop.trf.xlu0
        %v641 = vpop.trf.xlu0
        %v642 = vpop.trf.xlu0
        %643 = vxpose.xlu0.c.b16.start [1/8] %v490, 128
        %644 = vxpose.xlu0.c.b16.cont [2/8] 0, 128
        %645 = vxpose.xlu0.c.b16.cont [3/8] 0, 128
        %646 = vxpose.xlu0.c.b16.cont [4/8] 0, 128
        %647 = vxpose.xlu0.c.b16.cont [5/8] 0, 128
        %648 = vxpose.xlu0.c.b16.cont [6/8] 0, 128
        %649 = vxpose.xlu0.c.b16.cont [7/8] 0, 128
        %650 = vxpose.xlu0.c.b16.end [8/8] 0, 128
        %v651 = vpop.trf.xlu0
        %v652 = vpop.trf.xlu0
        %v653 = vpop.trf.xlu0
        %v654 = vpop.trf.xlu0
        %v655 = vpop.trf.xlu0
        %v656 = vpop.trf.xlu0
        %v657 = vpop.trf.xlu0
        %v658 = vpop.trf.xlu0
        %659 = vxpose.xlu0.c.b16.start [1/8] %v491, 128
        %660 = vxpose.xlu0.c.b16.cont [2/8] 0, 128
        %661 = vxpose.xlu0.c.b16.cont [3/8] 0, 128
        %662 = vxpose.xlu0.c.b16.cont [4/8] 0, 128
        %663 = vxpose.xlu0.c.b16.cont [5/8] 0, 128
        %664 = vxpose.xlu0.c.b16.cont [6/8] 0, 128
        %665 = vxpose.xlu0.c.b16.cont [7/8] 0, 128
        %666 = vxpose.xlu0.c.b16.end [8/8] 0, 128
        %v667 = vpop.trf.xlu0
        %v668 = vpop.trf.xlu0
        %v669 = vpop.trf.xlu0
        %v670 = vpop.trf.xlu0
        %v671 = vpop.trf.xlu0
        %v672 = vpop.trf.xlu0
        %v673 = vpop.trf.xlu0
        %v674 = vpop.trf.xlu0
        %675 = vxpose.xlu0.c.b16.start [1/8] %v492, 128
        %676 = vxpose.xlu0.c.b16.cont [2/8] 0, 128
        %677 = vxpose.xlu0.c.b16.cont [3/8] 0, 128
        %678 = vxpose.xlu0.c.b16.cont [4/8] 0, 128
        %679 = vxpose.xlu0.c.b16.cont [5/8] 0, 128
        %680 = vxpose.xlu0.c.b16.cont [6/8] 0, 128
        %681 = vxpose.xlu0.c.b16.cont [7/8] 0, 128
        %682 = vxpose.xlu0.c.b16.end [8/8] 0, 128
        %v683 = vpop.trf.xlu0
        %v684 = vpop.trf.xlu0
        %v685 = vpop.trf.xlu0
        %v686 = vpop.trf.xlu0
        %v687 = vpop.trf.xlu0
        %v688 = vpop.trf.xlu0
        %v689 = vpop.trf.xlu0
        %v690 = vpop.trf.xlu0
        %v691 = vrot.slane %v635, 4
        %v692 = vsel %vm507, %v691, %v571
        %v694 = vunpack.c.l.s4 1983009808
        %v695 = vunpack.c.0.s8 %v694
        %v696 = vperm.slane %v692, %v695
        %v697 = vrot.slane %v667, 4
        %v698 = vsel %vm507, %v697, %v603
        %v700 = vunpack.c.l.s4 1983009808
        %v701 = vunpack.c.0.s8 %v700
        %v702 = vperm.slane %v698, %v701
        %v703 = vrot.slane %v702, 4
        %v704 = vsel %vm507, %v703, %v696
        %v705 = vrot.slane %v696, 4
        %v706 = vsel %vm507, %v702, %v705
        %v708 = vunpack.c.l.s4 1934713408
        %v709 = vunpack.c.0.s8 %v708
        %v710 = vperm.slane %v704, %v709
        %v712 = vunpack.c.l.s4 1934713408
        %v713 = vunpack.c.0.s8 %v712
        %v714 = vperm.slane %v706, %v713
        %v715 = vrot.slane %v710, 4
        %v716 = vsel %vm507, 0, %v715
        %v717 = vrot.slane %v714, 4
        %v718 = vsel %vm507, 0, %v717
        %v719 = vrot.slane %v651, 4
        %v720 = vsel %vm507, %v719, %v587
        %v722 = vunpack.c.l.s4 1983009808
        %v723 = vunpack.c.0.s8 %v722
        %v724 = vperm.slane %v720, %v723
        %v725 = vrot.slane %v683, 4
        %v726 = vsel %vm507, %v725, %v619
        %v728 = vunpack.c.l.s4 1983009808
        %v729 = vunpack.c.0.s8 %v728
        %v730 = vperm.slane %v726, %v729
        %v731 = vrot.slane %v730, 4
        %v732 = vsel %vm507, %v731, %v724
        %v733 = vrot.slane %v724, 4
        %v734 = vsel %vm507, %v730, %v733
        %v736 = vunpack.c.l.s4 1934713408
        %v737 = vunpack.c.0.s8 %v736
        %v738 = vperm.slane %v732, %v737
        %v740 = vunpack.c.l.s4 1934713408
        %v741 = vunpack.c.0.s8 %v740
        %v742 = vperm.slane %v734, %v741
        %v743 = vrot.slane %v738, 4
        %v744 = vsel %vm507, 0, %v743
        %v745 = vrot.slane %v742, 4
        %v746 = vsel %vm507, 0, %v745
        %v749 = vpack.i.b16 %v738, %v710
        %v751 = vshrl.u32 %v710, 16
        %v752 = vshrl.u32 %v738, 16
        %v753 = vpack.i.b16 %v752, %v751
        %v757 = vpack.i.b16 %v744, %v716
        %v759 = vshrl.u32 %v716, 16
        %v760 = vshrl.u32 %v744, 16
        %v761 = vpack.i.b16 %v760, %v759
        %v765 = vpack.i.b16 %v742, %v714
        %v767 = vshrl.u32 %v714, 16
        %v768 = vshrl.u32 %v742, 16
        %v769 = vpack.i.b16 %v768, %v767
        %v773 = vpack.i.b16 %v746, %v718
        %v775 = vshrl.u32 %v718, 16
        %v776 = vshrl.u32 %v746, 16
        %v777 = vpack.i.b16 %v776, %v775
        %779 = vxpose.xlu0.c.b16.start [1/8] %v749, 128
        %780 = vxpose.xlu0.c.b16.cont [2/8] 0, 128
        %781 = vxpose.xlu0.c.b16.cont [3/8] 0, 128
        %782 = vxpose.xlu0.c.b16.cont [4/8] 0, 128
        %783 = vxpose.xlu0.c.b16.cont [5/8] 0, 128
        %784 = vxpose.xlu0.c.b16.cont [6/8] 0, 128
        %785 = vxpose.xlu0.c.b16.cont [7/8] 0, 128
        %786 = vxpose.xlu0.c.b16.end [8/8] 0, 128
        %v787 = vpop.trf.xlu0
        %v788 = vpop.trf.xlu0
        %v789 = vpop.trf.xlu0
        %v790 = vpop.trf.xlu0
        %v791 = vpop.trf.xlu0
        %v792 = vpop.trf.xlu0
        %v793 = vpop.trf.xlu0
        %v794 = vpop.trf.xlu0
        %795 = vxpose.xlu0.c.b16.start [1/8] %v753, 128
        %796 = vxpose.xlu0.c.b16.cont [2/8] 0, 128
        %797 = vxpose.xlu0.c.b16.cont [3/8] 0, 128
        %798 = vxpose.xlu0.c.b16.cont [4/8] 0, 128
        %799 = vxpose.xlu0.c.b16.cont [5/8] 0, 128
        %800 = vxpose.xlu0.c.b16.cont [6/8] 0, 128
        %801 = vxpose.xlu0.c.b16.cont [7/8] 0, 128
        %802 = vxpose.xlu0.c.b16.end [8/8] 0, 128
        %v803 = vpop.trf.xlu0
        %v804 = vpop.trf.xlu0
        %v805 = vpop.trf.xlu0
        %v806 = vpop.trf.xlu0
        %v807 = vpop.trf.xlu0
        %v808 = vpop.trf.xlu0
        %v809 = vpop.trf.xlu0
        %v810 = vpop.trf.xlu0
        %811 = vxpose.xlu0.c.b16.start [1/8] %v757, 128
        %812 = vxpose.xlu0.c.b16.cont [2/8] 0, 128
        %813 = vxpose.xlu0.c.b16.cont [3/8] 0, 128
        %814 = vxpose.xlu0.c.b16.cont [4/8] 0, 128
        %815 = vxpose.xlu0.c.b16.cont [5/8] 0, 128
        %816 = vxpose.xlu0.c.b16.cont [6/8] 0, 128
        %817 = vxpose.xlu0.c.b16.cont [7/8] 0, 128
        %818 = vxpose.xlu0.c.b16.end [8/8] 0, 128
        %v819 = vpop.trf.xlu0
        %v820 = vpop.trf.xlu0
        %v821 = vpop.trf.xlu0
        %v822 = vpop.trf.xlu0
        %v823 = vpop.trf.xlu0
        %v824 = vpop.trf.xlu0
        %v825 = vpop.trf.xlu0
        %v826 = vpop.trf.xlu0
        %827 = vxpose.xlu0.c.b16.start [1/8] %v761, 128
        %828 = vxpose.xlu0.c.b16.cont [2/8] 0, 128
        %829 = vxpose.xlu0.c.b16.cont [3/8] 0, 128
        %830 = vxpose.xlu0.c.b16.cont [4/8] 0, 128
        %831 = vxpose.xlu0.c.b16.cont [5/8] 0, 128
        %832 = vxpose.xlu0.c.b16.cont [6/8] 0, 128
        %833 = vxpose.xlu0.c.b16.cont [7/8] 0, 128
        %834 = vxpose.xlu0.c.b16.end [8/8] 0, 128
        %v835 = vpop.trf.xlu0
        %v836 = vpop.trf.xlu0
        %v837 = vpop.trf.xlu0
        %v838 = vpop.trf.xlu0
        %v839 = vpop.trf.xlu0
        %v840 = vpop.trf.xlu0
        %v841 = vpop.trf.xlu0
        %v842 = vpop.trf.xlu0
        %843 = vxpose.xlu0.c.b16.start [1/8] %v765, 128
        %844 = vxpose.xlu0.c.b16.cont [2/8] 0, 128
        %845 = vxpose.xlu0.c.b16.cont [3/8] 0, 128
        %846 = vxpose.xlu0.c.b16.cont [4/8] 0, 128
        %847 = vxpose.xlu0.c.b16.cont [5/8] 0, 128
        %848 = vxpose.xlu0.c.b16.cont [6/8] 0, 128
        %849 = vxpose.xlu0.c.b16.cont [7/8] 0, 128
        %850 = vxpose.xlu0.c.b16.end [8/8] 0, 128
        %v851 = vpop.trf.xlu0
        %v852 = vpop.trf.xlu0
        %v853 = vpop.trf.xlu0
        %v854 = vpop.trf.xlu0
        %v855 = vpop.trf.xlu0
        %v856 = vpop.trf.xlu0
        %v857 = vpop.trf.xlu0
        %v858 = vpop.trf.xlu0
        %859 = vxpose.xlu0.c.b16.start [1/8] %v769, 128
        %860 = vxpose.xlu0.c.b16.cont [2/8] 0, 128
        %861 = vxpose.xlu0.c.b16.cont [3/8] 0, 128
        %862 = vxpose.xlu0.c.b16.cont [4/8] 0, 128
        %863 = vxpose.xlu0.c.b16.cont [5/8] 0, 128
        %864 = vxpose.xlu0.c.b16.cont [6/8] 0, 128
        %865 = vxpose.xlu0.c.b16.cont [7/8] 0, 128
        %866 = vxpose.xlu0.c.b16.end [8/8] 0, 128
        %v867 = vpop.trf.xlu0
        %v868 = vpop.trf.xlu0
        %v869 = vpop.trf.xlu0
        %v870 = vpop.trf.xlu0
        %v871 = vpop.trf.xlu0
        %v872 = vpop.trf.xlu0
        %v873 = vpop.trf.xlu0
        %v874 = vpop.trf.xlu0
        %875 = vxpose.xlu0.c.b16.start [1/8] %v773, 128
        %876 = vxpose.xlu0.c.b16.cont [2/8] 0, 128
        %877 = vxpose.xlu0.c.b16.cont [3/8] 0, 128
        %878 = vxpose.xlu0.c.b16.cont [4/8] 0, 128
        %879 = vxpose.xlu0.c.b16.cont [5/8] 0, 128
        %880 = vxpose.xlu0.c.b16.cont [6/8] 0, 128
        %881 = vxpose.xlu0.c.b16.cont [7/8] 0, 128
        %882 = vxpose.xlu0.c.b16.end [8/8] 0, 128
        %v883 = vpop.trf.xlu0
        %v884 = vpop.trf.xlu0
        %v885 = vpop.trf.xlu0
        %v886 = vpop.trf.xlu0
        %v887 = vpop.trf.xlu0
        %v888 = vpop.trf.xlu0
        %v889 = vpop.trf.xlu0
        %v890 = vpop.trf.xlu0
        %891 = vxpose.xlu0.c.b16.start [1/8] %v777, 128
        %892 = vxpose.xlu0.c.b16.cont [2/8] 0, 128
        %893 = vxpose.xlu0.c.b16.cont [3/8] 0, 128
        %894 = vxpose.xlu0.c.b16.cont [4/8] 0, 128
        %895 = vxpose.xlu0.c.b16.cont [5/8] 0, 128
        %896 = vxpose.xlu0.c.b16.cont [6/8] 0, 128
        %897 = vxpose.xlu0.c.b16.cont [7/8] 0, 128
        %898 = vxpose.xlu0.c.b16.end [8/8] 0, 128
        %v899 = vpop.trf.xlu0
        %v900 = vpop.trf.xlu0
        %v901 = vpop.trf.xlu0
        %v902 = vpop.trf.xlu0
        %v903 = vpop.trf.xlu0
        %v904 = vpop.trf.xlu0
        %v905 = vpop.trf.xlu0
        %v906 = vpop.trf.xlu0
        %v907 = vrot.slane %v851, 4
        %v908 = vsel %vm507, %v907, %v787
        %v910 = vunpack.c.l.s4 1983009808
        %v911 = vunpack.c.0.s8 %v910
        %v912 = vperm.slane %v908, %v911
        %v913 = vrot.slane %v883, 4
        %v914 = vsel %vm507, %v913, %v819
        %v916 = vunpack.c.l.s4 1983009808
        %v917 = vunpack.c.0.s8 %v916
        %v918 = vperm.slane %v914, %v917
        %v919 = vrot.slane %v918, 4
        %v920 = vsel %vm507, %v919, %v912
        %v922 = vunpack.c.l.s4 1934713408
        %v923 = vunpack.c.0.s8 %v922
        %v924 = vperm.slane %v920, %v923
        %v925 = vrot.slane %v924, 4
        %v926 = vsel %vm507, 0, %v925
        %v927 = vrot.slane %v867, 4
        %v928 = vsel %vm507, %v927, %v803
        %v930 = vunpack.c.l.s4 1983009808
        %v931 = vunpack.c.0.s8 %v930
        %v932 = vperm.slane %v928, %v931
        %v933 = vrot.slane %v899, 4
        %v934 = vsel %vm507, %v933, %v835
        %v936 = vunpack.c.l.s4 1983009808
        %v937 = vunpack.c.0.s8 %v936
        %v938 = vperm.slane %v934, %v937
        %v939 = vrot.slane %v938, 4
        %v940 = vsel %vm507, %v939, %v932
        %v942 = vunpack.c.l.s4 1934713408
        %v943 = vunpack.c.0.s8 %v942
        %v944 = vperm.slane %v940, %v943
        %v945 = vrot.slane %v944, 4
        %v946 = vsel %vm507, 0, %v945
        %v949 = vpack.i.b16 %v944, %v924
        %v950 = vshrl.u32 %v924, 16
        %v951 = vshrl.u32 %v944, 16
        %v952 = vpack.i.b16 %v951, %v950
        %v955 = vpack.i.b16 %v946, %v926
        %v956 = vshrl.u32 %v926, 16
        %v957 = vshrl.u32 %v946, 16
        %v958 = vpack.i.b16 %v957, %v956
        %960 = vst [vmem:[#allocation1] ss:$4 sm:$0xff] %v541
        %s962 = scalar_lea.vmem [#allocation1], 1
        %963 = vst [vmem:[%s962] ss:$4 sm:$0xff] %v553
        %v964 = vld.sshfl [vmem:[#allocation1] sm:$0xff pattern:$0x73625140]
        %vm965 = vcmask 64512
        %v966 = vsel %vm965, %v964, 0
        %vm968 = vcmask 1043456
        %v970 = vsel %vm968, %v949, 0
        %972 = vmatpush.bf16.msra.mxu0 0
        %973 = vmatpush.bf16.msra.mxu0 0
        %974 = vmatpush.bf16.msra.mxu0 0
        %975 = vmatpush.bf16.msra.mxu0 0
        %976 = vmatpush.bf16.msra.mxu0 0
        %977 = vmatpush.bf16.msra.mxu0 0
        %978 = vmatpush.bf16.msra.mxu0 0
        %979 = vmatpush.bf16.msra.mxu0 %v970
        %980 = vmatmul.bf16.gmra.mxu0 %v966
        %v981 = vpop.f32.mrf.mxu0
        %v982 = vadd.f32 0.0, %v981
        %v983 = vpop.f32.mrf.mxu0
        %984 = vdwg.mxu0
        %986 = vst [vmem:[#allocation1] ss:$4 sm:$0xff] %v544
        %s988 = scalar_lea.vmem [#allocation1], 1
        %989 = vst [vmem:[%s988] ss:$4 sm:$0xff] %v556
        %v990 = vld.sshfl [vmem:[#allocation1] sm:$0xff pattern:$0x73625140]
        %v991 = vsel %vm965, %v990, 0
        %v994 = vsel %vm968, %v952, 0
        %996 = vmatpush.bf16.msra.mxu0 0
        %997 = vmatpush.bf16.msra.mxu0 0
        %998 = vmatpush.bf16.msra.mxu0 0
        %999 = vmatpush.bf16.msra.mxu0 0
        %1000 = vmatpush.bf16.msra.mxu0 0
        %1001 = vmatpush.bf16.msra.mxu0 0
        %1002 = vmatpush.bf16.msra.mxu0 0
        %1003 = vmatpush.bf16.msra.mxu0 %v994
        %1004 = vmatmul.bf16.gmra.mxu0 %v991
        %v1005 = vpop.f32.mrf.mxu0
        %v1006 = vadd.f32 0.0, %v1005
        %v1007 = vpop.f32.mrf.mxu0
        %1008 = vdwg.mxu0
        %1010 = vst [vmem:[#allocation1] ss:$4 sm:$0xff] %v547
        %s1012 = scalar_lea.vmem [#allocation1], 1
        %1013 = vst [vmem:[%s1012] ss:$4 sm:$0xff] %v559
        %v1014 = vld.sshfl [vmem:[#allocation1] sm:$0xff pattern:$0x73625140]
        %v1015 = vsel %vm965, %v1014, 0
        %v1018 = vsel %vm968, %v955, 0
        %1020 = vmatpush.bf16.msra.mxu0 0
        %1021 = vmatpush.bf16.msra.mxu0 0
        %1022 = vmatpush.bf16.msra.mxu0 0
        %1023 = vmatpush.bf16.msra.mxu0 0
        %1024 = vmatpush.bf16.msra.mxu0 0
        %1025 = vmatpush.bf16.msra.mxu0 0
        %1026 = vmatpush.bf16.msra.mxu0 0
        %1027 = vmatpush.bf16.msra.mxu0 %v1018
        %1028 = vmatmul.bf16.gmra.mxu0 %v1015
        %v1029 = vpop.f32.mrf.mxu0
        %v1030 = vadd.f32 0.0, %v1029
        %v1031 = vpop.f32.mrf.mxu0
        %1032 = vdwg.mxu0
        %1034 = vst [vmem:[#allocation1] ss:$4 sm:$0xff] %v550
        %s1036 = scalar_lea.vmem [#allocation1], 1
        %1037 = vst [vmem:[%s1036] ss:$4 sm:$0xff] %v562
        %v1038 = vld.sshfl [vmem:[#allocation1] sm:$0xff pattern:$0x73625140]
        %v1039 = vsel %vm965, %v1038, 0
        %v1042 = vsel %vm968, %v958, 0
        %1044 = vmatpush.bf16.msra.mxu0 0
        %1045 = vmatpush.bf16.msra.mxu0 0
        %1046 = vmatpush.bf16.msra.mxu0 0
        %1047 = vmatpush.bf16.msra.mxu0 0
        %1048 = vmatpush.bf16.msra.mxu0 0
        %1049 = vmatpush.bf16.msra.mxu0 0
        %1050 = vmatpush.bf16.msra.mxu0 0
        %1051 = vmatpush.bf16.msra.mxu0 %v1042
        %1052 = vmatmul.bf16.gmra.mxu0 %v1039
        %v1053 = vpop.f32.mrf.mxu0
        %v1054 = vadd.f32 0.0, %v1053
        %v1055 = vpop.f32.mrf.mxu0
        %1056 = vdwg.mxu0
        %v1057 = vmul.f32 %v982, 0.35355338
        %v1058 = vmul.f32 %v1006, 0.35355338
        %v1059 = vmul.f32 %v1030, 0.35355338
        %v1060 = vmul.f32 %v1054, 0.35355338
        %v1061 = vsel %vm965, %v1057, -inf
        %1062 = vmax.xlane.f32.xlu0 %v1061
        %v1063 = vpop.xlane.xlu0 %1062
        %v1064 = vsel %vm965, %v1058, -inf
        %1065 = vmax.xlane.f32.xlu0 %v1064
        %v1066 = vpop.xlane.xlu0 %1065
        %v1067 = vsel %vm965, %v1059, -inf
        %1068 = vmax.xlane.f32.xlu0 %v1067
        %v1069 = vpop.xlane.xlu0 %1068
        %v1070 = vsel %vm965, %v1060, -inf
        %1071 = vmax.xlane.f32.xlu0 %v1070
        %v1072 = vpop.xlane.xlu0 %1071
        %v1073 = vsub.f32 %v1057, %v1063
        %v1074 = vsub.f32 %v1058, %v1066
        %v1075 = vsub.f32 %v1059, %v1069
        %v1076 = vsub.f32 %v1060, %v1072
        %v1077 = vmul.f32 %v1073, 1.442695
        %v1078 = vpow.pop %v1077
        %v1079 = vmul.f32 %v1074, 1.442695
        %v1080 = vpow.pop %v1079
        %v1081 = vmul.f32 %v1075, 1.442695
        %v1082 = vpow.pop %v1081
        %v1083 = vmul.f32 %v1076, 1.442695
        %v1084 = vpow.pop %v1083
        %v1085 = vsel %vm965, %v1078, 0.0
        %1086 = vadd.xlane.f32.xlu0 %v1085
        %v1087 = vpop.xlane.xlu0 %1086
        %v1088 = vsel %vm965, %v1080, 0.0
        %1089 = vadd.xlane.f32.xlu0 %v1088
        %v1090 = vpop.xlane.xlu0 %1089
        %v1091 = vsel %vm965, %v1082, 0.0
        %1092 = vadd.xlane.f32.xlu0 %v1091
        %v1093 = vpop.xlane.xlu0 %1092
        %v1094 = vsel %vm965, %v1084, 0.0
        %1095 = vadd.xlane.f32.xlu0 %v1094
        %v1096 = vpop.xlane.xlu0 %1095
        %v1097 = vrcp.pop %v1087
        %v1098 = vmul.f32 %v1087, %v1097
        %v1099 = vsub.f32 1.0, %v1098
        %v1100 = vmul.f32 %v1097, %v1099
        %v1101 = vadd.f32 %v1097, %v1100
        %vm1102 = vweird.f32 %v1087
        %vm1103 = vweird.f32 %v1097
        %vm1104 = vmor %vm1102, %vm1103
        %v1105 = vsel %vm1104, %v1097, %v1101
        %v1106 = vand.u32 2147483647, %v1087
        %vm1107 = vcmp.eq.f32.partialorder %v1106, 8.507059e+37
        %v1108 = vand.u32 %v1087, 2147483648
        %v1109 = vor.u32 1.1754944e-38, %v1108
        %v1110 = vsel %vm1107, %v1109, %v1105
        %v1111 = vmul.f32 %v1078, %v1110
        %v1112 = vrcp.pop %v1090
        %v1113 = vmul.f32 %v1090, %v1112
        %v1114 = vsub.f32 1.0, %v1113
        %v1115 = vmul.f32 %v1112, %v1114
        %v1116 = vadd.f32 %v1112, %v1115
        %vm1117 = vweird.f32 %v1090
        %vm1118 = vweird.f32 %v1112
        %vm1119 = vmor %vm1117, %vm1118
        %v1120 = vsel %vm1119, %v1112, %v1116
        %v1121 = vand.u32 2147483647, %v1090
        %vm1122 = vcmp.eq.f32.partialorder %v1121, 8.507059e+37
        %v1123 = vand.u32 %v1090, 2147483648
        %v1124 = vor.u32 1.1754944e-38, %v1123
        %v1125 = vsel %vm1122, %v1124, %v1120
        %v1126 = vmul.f32 %v1080, %v1125
        %v1127 = vrcp.pop %v1093
        %v1128 = vmul.f32 %v1093, %v1127
        %v1129 = vsub.f32 1.0, %v1128
        %v1130 = vmul.f32 %v1127, %v1129
        %v1131 = vadd.f32 %v1127, %v1130
        %vm1132 = vweird.f32 %v1093
        %vm1133 = vweird.f32 %v1127
        %vm1134 = vmor %vm1132, %vm1133
        %v1135 = vsel %vm1134, %v1127, %v1131
        %v1136 = vand.u32 2147483647, %v1093
        %vm1137 = vcmp.eq.f32.partialorder %v1136, 8.507059e+37
        %v1138 = vand.u32 %v1093, 2147483648
        %v1139 = vor.u32 1.1754944e-38, %v1138
        %v1140 = vsel %vm1137, %v1139, %v1135
        %v1141 = vmul.f32 %v1082, %v1140
        %v1142 = vrcp.pop %v1096
        %v1143 = vmul.f32 %v1096, %v1142
        %v1144 = vsub.f32 1.0, %v1143
        %v1145 = vmul.f32 %v1142, %v1144
        %v1146 = vadd.f32 %v1142, %v1145
        %vm1147 = vweird.f32 %v1096
        %vm1148 = vweird.f32 %v1142
        %vm1149 = vmor %vm1147, %vm1148
        %v1150 = vsel %vm1149, %v1142, %v1146
        %v1151 = vand.u32 2147483647, %v1096
        %vm1152 = vcmp.eq.f32.partialorder %v1151, 8.507059e+37
        %v1153 = vand.u32 %v1096, 2147483648
        %v1154 = vor.u32 1.1754944e-38, %v1153
        %v1155 = vsel %vm1152, %v1154, %v1150
        %v1156 = vmul.f32 %v1084, %v1155
        %v1157 = vpack.c.bf16 %v1111, %v1111
        %v1158 = vpack.c.bf16 %v1126, %v1126
        %v1159 = vpack.c.bf16 %v1141, %v1141
        %v1160 = vpack.c.bf16 %v1156, %v1156
        %1161 = vxpose.xlu0.c.b16.start [1/8] %v493, 128
        %1162 = vxpose.xlu0.c.b16.cont [2/8] 0, 128
        %1163 = vxpose.xlu0.c.b16.cont [3/8] 0, 128
        %1164 = vxpose.xlu0.c.b16.cont [4/8] 0, 128
        %1165 = vxpose.xlu0.c.b16.cont [5/8] 0, 128
        %1166 = vxpose.xlu0.c.b16.cont [6/8] 0, 128
        %1167 = vxpose.xlu0.c.b16.cont [7/8] 0, 128
        %1168 = vxpose.xlu0.c.b16.end [8/8] 0, 128
        %v1169 = vpop.trf.xlu0
        %v1170 = vpop.trf.xlu0
        %v1171 = vpop.trf.xlu0
        %v1172 = vpop.trf.xlu0
        %v1173 = vpop.trf.xlu0
        %v1174 = vpop.trf.xlu0
        %v1175 = vpop.trf.xlu0
        %v1176 = vpop.trf.xlu0
        %1177 = vxpose.xlu0.c.b16.start [1/8] %v494, 128
        %1178 = vxpose.xlu0.c.b16.cont [2/8] 0, 128
        %1179 = vxpose.xlu0.c.b16.cont [3/8] 0, 128
        %1180 = vxpose.xlu0.c.b16.cont [4/8] 0, 128
        %1181 = vxpose.xlu0.c.b16.cont [5/8] 0, 128
        %1182 = vxpose.xlu0.c.b16.cont [6/8] 0, 128
        %1183 = vxpose.xlu0.c.b16.cont [7/8] 0, 128
        %1184 = vxpose.xlu0.c.b16.end [8/8] 0, 128
        %v1185 = vpop.trf.xlu0
        %v1186 = vpop.trf.xlu0
        %v1187 = vpop.trf.xlu0
        %v1188 = vpop.trf.xlu0
        %v1189 = vpop.trf.xlu0
        %v1190 = vpop.trf.xlu0
        %v1191 = vpop.trf.xlu0
        %v1192 = vpop.trf.xlu0
        %1193 = vxpose.xlu0.c.b16.start [1/8] %v495, 128
        %1194 = vxpose.xlu0.c.b16.cont [2/8] 0, 128
        %1195 = vxpose.xlu0.c.b16.cont [3/8] 0, 128
        %1196 = vxpose.xlu0.c.b16.cont [4/8] 0, 128
        %1197 = vxpose.xlu0.c.b16.cont [5/8] 0, 128
        %1198 = vxpose.xlu0.c.b16.cont [6/8] 0, 128
        %1199 = vxpose.xlu0.c.b16.cont [7/8] 0, 128
        %1200 = vxpose.xlu0.c.b16.end [8/8] 0, 128
        %v1201 = vpop.trf.xlu0
        %v1202 = vpop.trf.xlu0
        %v1203 = vpop.trf.xlu0
        %v1204 = vpop.trf.xlu0
        %v1205 = vpop.trf.xlu0
        %v1206 = vpop.trf.xlu0
        %v1207 = vpop.trf.xlu0
        %v1208 = vpop.trf.xlu0
        %1209 = vxpose.xlu0.c.b16.start [1/8] %v496, 128
        %1210 = vxpose.xlu0.c.b16.cont [2/8] 0, 128
        %1211 = vxpose.xlu0.c.b16.cont [3/8] 0, 128
        %1212 = vxpose.xlu0.c.b16.cont [4/8] 0, 128
        %1213 = vxpose.xlu0.c.b16.cont [5/8] 0, 128
        %1214 = vxpose.xlu0.c.b16.cont [6/8] 0, 128
        %1215 = vxpose.xlu0.c.b16.cont [7/8] 0, 128
        %1216 = vxpose.xlu0.c.b16.end [8/8] 0, 128
        %v1217 = vpop.trf.xlu0
        %v1218 = vpop.trf.xlu0
        %v1219 = vpop.trf.xlu0
        %v1220 = vpop.trf.xlu0
        %v1221 = vpop.trf.xlu0
        %v1222 = vpop.trf.xlu0
        %v1223 = vpop.trf.xlu0
        %v1224 = vpop.trf.xlu0
        %1225 = vxpose.xlu0.c.b16.start [1/8] %v497, 128
        %1226 = vxpose.xlu0.c.b16.cont [2/8] 0, 128
        %1227 = vxpose.xlu0.c.b16.cont [3/8] 0, 128
        %1228 = vxpose.xlu0.c.b16.cont [4/8] 0, 128
        %1229 = vxpose.xlu0.c.b16.cont [5/8] 0, 128
        %1230 = vxpose.xlu0.c.b16.cont [6/8] 0, 128
        %1231 = vxpose.xlu0.c.b16.cont [7/8] 0, 128
        %1232 = vxpose.xlu0.c.b16.end [8/8] 0, 128
        %v1233 = vpop.trf.xlu0
        %v1234 = vpop.trf.xlu0
        %v1235 = vpop.trf.xlu0
        %v1236 = vpop.trf.xlu0
        %v1237 = vpop.trf.xlu0
        %v1238 = vpop.trf.xlu0
        %v1239 = vpop.trf.xlu0
        %v1240 = vpop.trf.xlu0
        %1241 = vxpose.xlu0.c.b16.start [1/8] %v498, 128
        %1242 = vxpose.xlu0.c.b16.cont [2/8] 0, 128
        %1243 = vxpose.xlu0.c.b16.cont [3/8] 0, 128
        %1244 = vxpose.xlu0.c.b16.cont [4/8] 0, 128
        %1245 = vxpose.xlu0.c.b16.cont [5/8] 0, 128
        %1246 = vxpose.xlu0.c.b16.cont [6/8] 0, 128
        %1247 = vxpose.xlu0.c.b16.cont [7/8] 0, 128
        %1248 = vxpose.xlu0.c.b16.end [8/8] 0, 128
        %v1249 = vpop.trf.xlu0
        %v1250 = vpop.trf.xlu0
        %v1251 = vpop.trf.xlu0
        %v1252 = vpop.trf.xlu0
        %v1253 = vpop.trf.xlu0
        %v1254 = vpop.trf.xlu0
        %v1255 = vpop.trf.xlu0
        %v1256 = vpop.trf.xlu0
        %1257 = vxpose.xlu0.c.b16.start [1/8] %v499, 128
        %1258 = vxpose.xlu0.c.b16.cont [2/8] 0, 128
        %1259 = vxpose.xlu0.c.b16.cont [3/8] 0, 128
        %1260 = vxpose.xlu0.c.b16.cont [4/8] 0, 128
        %1261 = vxpose.xlu0.c.b16.cont [5/8] 0, 128
        %1262 = vxpose.xlu0.c.b16.cont [6/8] 0, 128
        %1263 = vxpose.xlu0.c.b16.cont [7/8] 0, 128
        %1264 = vxpose.xlu0.c.b16.end [8/8] 0, 128
        %v1265 = vpop.trf.xlu0
        %v1266 = vpop.trf.xlu0
        %v1267 = vpop.trf.xlu0
        %v1268 = vpop.trf.xlu0
        %v1269 = vpop.trf.xlu0
        %v1270 = vpop.trf.xlu0
        %v1271 = vpop.trf.xlu0
        %v1272 = vpop.trf.xlu0
        %1273 = vxpose.xlu0.c.b16.start [1/8] %v500, 128
        %1274 = vxpose.xlu0.c.b16.cont [2/8] 0, 128
        %1275 = vxpose.xlu0.c.b16.cont [3/8] 0, 128
        %1276 = vxpose.xlu0.c.b16.cont [4/8] 0, 128
        %1277 = vxpose.xlu0.c.b16.cont [5/8] 0, 128
        %1278 = vxpose.xlu0.c.b16.cont [6/8] 0, 128
        %1279 = vxpose.xlu0.c.b16.cont [7/8] 0, 128
        %1280 = vxpose.xlu0.c.b16.end [8/8] 0, 128
        %v1281 = vpop.trf.xlu0
        %v1282 = vpop.trf.xlu0
        %v1283 = vpop.trf.xlu0
        %v1284 = vpop.trf.xlu0
        %v1285 = vpop.trf.xlu0
        %v1286 = vpop.trf.xlu0
        %v1287 = vpop.trf.xlu0
        %v1288 = vpop.trf.xlu0
        %v1289 = vrot.slane %v1233, 4
        %v1290 = vsel %vm507, %v1289, %v1169
        %v1292 = vunpack.c.l.s4 1983009808
        %v1293 = vunpack.c.0.s8 %v1292
        %v1294 = vperm.slane %v1290, %v1293
        %v1295 = vrot.slane %v1265, 4
        %v1296 = vsel %vm507, %v1295, %v1201
        %v1298 = vunpack.c.l.s4 1983009808
        %v1299 = vunpack.c.0.s8 %v1298
        %v1300 = vperm.slane %v1296, %v1299
        %v1301 = vrot.slane %v1300, 4
        %v1302 = vsel %vm507, %v1301, %v1294
        %v1303 = vrot.slane %v1294, 4
        %v1304 = vsel %vm507, %v1300, %v1303
        %v1306 = vunpack.c.l.s4 1934713408
        %v1307 = vunpack.c.0.s8 %v1306
        %v1308 = vperm.slane %v1302, %v1307
        %v1310 = vunpack.c.l.s4 1934713408
        %v1311 = vunpack.c.0.s8 %v1310
        %v1312 = vperm.slane %v1304, %v1311
        %v1313 = vrot.slane %v1308, 4
        %v1314 = vsel %vm507, 0, %v1313
        %v1315 = vrot.slane %v1312, 4
        %v1316 = vsel %vm507, 0, %v1315
        %v1317 = vrot.slane %v1249, 4
        %v1318 = vsel %vm507, %v1317, %v1185
        %v1320 = vunpack.c.l.s4 1983009808
        %v1321 = vunpack.c.0.s8 %v1320
        %v1322 = vperm.slane %v1318, %v1321
        %v1323 = vrot.slane %v1281, 4
        %v1324 = vsel %vm507, %v1323, %v1217
        %v1326 = vunpack.c.l.s4 1983009808
        %v1327 = vunpack.c.0.s8 %v1326
        %v1328 = vperm.slane %v1324, %v1327
        %v1329 = vrot.slane %v1328, 4
        %v1330 = vsel %vm507, %v1329, %v1322
        %v1331 = vrot.slane %v1322, 4
        %v1332 = vsel %vm507, %v1328, %v1331
        %v1334 = vunpack.c.l.s4 1934713408
        %v1335 = vunpack.c.0.s8 %v1334
        %v1336 = vperm.slane %v1330, %v1335
        %v1338 = vunpack.c.l.s4 1934713408
        %v1339 = vunpack.c.0.s8 %v1338
        %v1340 = vperm.slane %v1332, %v1339
        %v1341 = vrot.slane %v1336, 4
        %v1342 = vsel %vm507, 0, %v1341
        %v1343 = vrot.slane %v1340, 4
        %v1344 = vsel %vm507, 0, %v1343
        %v1347 = vpack.i.b16 %v1336, %v1308
        %v1349 = vshrl.u32 %v1308, 16
        %v1350 = vshrl.u32 %v1336, 16
        %v1351 = vpack.i.b16 %v1350, %v1349
        %v1355 = vpack.i.b16 %v1342, %v1314
        %v1357 = vshrl.u32 %v1314, 16
        %v1358 = vshrl.u32 %v1342, 16
        %v1359 = vpack.i.b16 %v1358, %v1357
        %v1363 = vpack.i.b16 %v1340, %v1312
        %v1365 = vshrl.u32 %v1312, 16
        %v1366 = vshrl.u32 %v1340, 16
        %v1367 = vpack.i.b16 %v1366, %v1365
        %v1371 = vpack.i.b16 %v1344, %v1316
        %v1373 = vshrl.u32 %v1316, 16
        %v1374 = vshrl.u32 %v1344, 16
        %v1375 = vpack.i.b16 %v1374, %v1373
        %1377 = vxpose.xlu0.c.b16.start [1/8] %v1347, 128
        %1378 = vxpose.xlu0.c.b16.cont [2/8] 0, 128
        %1379 = vxpose.xlu0.c.b16.cont [3/8] 0, 128
        %1380 = vxpose.xlu0.c.b16.cont [4/8] 0, 128
        %1381 = vxpose.xlu0.c.b16.cont [5/8] 0, 128
        %1382 = vxpose.xlu0.c.b16.cont [6/8] 0, 128
        %1383 = vxpose.xlu0.c.b16.cont [7/8] 0, 128
        %1384 = vxpose.xlu0.c.b16.end [8/8] 0, 128
        %v1385 = vpop.trf.xlu0
        %v1386 = vpop.trf.xlu0
        %v1387 = vpop.trf.xlu0
        %v1388 = vpop.trf.xlu0
        %v1389 = vpop.trf.xlu0
        %v1390 = vpop.trf.xlu0
        %v1391 = vpop.trf.xlu0
        %v1392 = vpop.trf.xlu0
        %1393 = vxpose.xlu0.c.b16.start [1/8] %v1351, 128
        %1394 = vxpose.xlu0.c.b16.cont [2/8] 0, 128
        %1395 = vxpose.xlu0.c.b16.cont [3/8] 0, 128
        %1396 = vxpose.xlu0.c.b16.cont [4/8] 0, 128
        %1397 = vxpose.xlu0.c.b16.cont [5/8] 0, 128
        %1398 = vxpose.xlu0.c.b16.cont [6/8] 0, 128
        %1399 = vxpose.xlu0.c.b16.cont [7/8] 0, 128
        %1400 = vxpose.xlu0.c.b16.end [8/8] 0, 128
        %v1401 = vpop.trf.xlu0
        %v1402 = vpop.trf.xlu0
        %v1403 = vpop.trf.xlu0
        %v1404 = vpop.trf.xlu0
        %v1405 = vpop.trf.xlu0
        %v1406 = vpop.trf.xlu0
        %v1407 = vpop.trf.xlu0
        %v1408 = vpop.trf.xlu0
        %1409 = vxpose.xlu0.c.b16.start [1/8] %v1355, 128
        %1410 = vxpose.xlu0.c.b16.cont [2/8] 0, 128
        %1411 = vxpose.xlu0.c.b16.cont [3/8] 0, 128
        %1412 = vxpose.xlu0.c.b16.cont [4/8] 0, 128
        %1413 = vxpose.xlu0.c.b16.cont [5/8] 0, 128
        %1414 = vxpose.xlu0.c.b16.cont [6/8] 0, 128
        %1415 = vxpose.xlu0.c.b16.cont [7/8] 0, 128
        %1416 = vxpose.xlu0.c.b16.end [8/8] 0, 128
        %v1417 = vpop.trf.xlu0
        %v1418 = vpop.trf.xlu0
        %v1419 = vpop.trf.xlu0
        %v1420 = vpop.trf.xlu0
        %v1421 = vpop.trf.xlu0
        %v1422 = vpop.trf.xlu0
        %v1423 = vpop.trf.xlu0
        %v1424 = vpop.trf.xlu0
        %1425 = vxpose.xlu0.c.b16.start [1/8] %v1359, 128
        %1426 = vxpose.xlu0.c.b16.cont [2/8] 0, 128
        %1427 = vxpose.xlu0.c.b16.cont [3/8] 0, 128
        %1428 = vxpose.xlu0.c.b16.cont [4/8] 0, 128
        %1429 = vxpose.xlu0.c.b16.cont [5/8] 0, 128
        %1430 = vxpose.xlu0.c.b16.cont [6/8] 0, 128
        %1431 = vxpose.xlu0.c.b16.cont [7/8] 0, 128
        %1432 = vxpose.xlu0.c.b16.end [8/8] 0, 128
        %v1433 = vpop.trf.xlu0
        %v1434 = vpop.trf.xlu0
        %v1435 = vpop.trf.xlu0
        %v1436 = vpop.trf.xlu0
        %v1437 = vpop.trf.xlu0
        %v1438 = vpop.trf.xlu0
        %v1439 = vpop.trf.xlu0
        %v1440 = vpop.trf.xlu0
        %1441 = vxpose.xlu0.c.b16.start [1/8] %v1363, 128
        %1442 = vxpose.xlu0.c.b16.cont [2/8] 0, 128
        %1443 = vxpose.xlu0.c.b16.cont [3/8] 0, 128
        %1444 = vxpose.xlu0.c.b16.cont [4/8] 0, 128
        %1445 = vxpose.xlu0.c.b16.cont [5/8] 0, 128
        %1446 = vxpose.xlu0.c.b16.cont [6/8] 0, 128
        %1447 = vxpose.xlu0.c.b16.cont [7/8] 0, 128
        %1448 = vxpose.xlu0.c.b16.end [8/8] 0, 128
        %v1449 = vpop.trf.xlu0
        %v1450 = vpop.trf.xlu0
        %v1451 = vpop.trf.xlu0
        %v1452 = vpop.trf.xlu0
        %v1453 = vpop.trf.xlu0
        %v1454 = vpop.trf.xlu0
        %v1455 = vpop.trf.xlu0
        %v1456 = vpop.trf.xlu0
        %1457 = vxpose.xlu0.c.b16.start [1/8] %v1367, 128
        %1458 = vxpose.xlu0.c.b16.cont [2/8] 0, 128
        %1459 = vxpose.xlu0.c.b16.cont [3/8] 0, 128
        %1460 = vxpose.xlu0.c.b16.cont [4/8] 0, 128
        %1461 = vxpose.xlu0.c.b16.cont [5/8] 0, 128
        %1462 = vxpose.xlu0.c.b16.cont [6/8] 0, 128
        %1463 = vxpose.xlu0.c.b16.cont [7/8] 0, 128
        %1464 = vxpose.xlu0.c.b16.end [8/8] 0, 128
        %v1465 = vpop.trf.xlu0
        %v1466 = vpop.trf.xlu0
        %v1467 = vpop.trf.xlu0
        %v1468 = vpop.trf.xlu0
        %v1469 = vpop.trf.xlu0
        %v1470 = vpop.trf.xlu0
        %v1471 = vpop.trf.xlu0
        %v1472 = vpop.trf.xlu0
        %1473 = vxpose.xlu0.c.b16.start [1/8] %v1371, 128
        %1474 = vxpose.xlu0.c.b16.cont [2/8] 0, 128
        %1475 = vxpose.xlu0.c.b16.cont [3/8] 0, 128
        %1476 = vxpose.xlu0.c.b16.cont [4/8] 0, 128
        %1477 = vxpose.xlu0.c.b16.cont [5/8] 0, 128
        %1478 = vxpose.xlu0.c.b16.cont [6/8] 0, 128
        %1479 = vxpose.xlu0.c.b16.cont [7/8] 0, 128
        %1480 = vxpose.xlu0.c.b16.end [8/8] 0, 128
        %v1481 = vpop.trf.xlu0
        %v1482 = vpop.trf.xlu0
        %v1483 = vpop.trf.xlu0
        %v1484 = vpop.trf.xlu0
        %v1485 = vpop.trf.xlu0
        %v1486 = vpop.trf.xlu0
        %v1487 = vpop.trf.xlu0
        %v1488 = vpop.trf.xlu0
        %1489 = vxpose.xlu0.c.b16.start [1/8] %v1375, 128
        %1490 = vxpose.xlu0.c.b16.cont [2/8] 0, 128
        %1491 = vxpose.xlu0.c.b16.cont [3/8] 0, 128
        %1492 = vxpose.xlu0.c.b16.cont [4/8] 0, 128
        %1493 = vxpose.xlu0.c.b16.cont [5/8] 0, 128
        %1494 = vxpose.xlu0.c.b16.cont [6/8] 0, 128
        %1495 = vxpose.xlu0.c.b16.cont [7/8] 0, 128
        %1496 = vxpose.xlu0.c.b16.end [8/8] 0, 128
        %v1497 = vpop.trf.xlu0
        %v1498 = vpop.trf.xlu0
        %v1499 = vpop.trf.xlu0
        %v1500 = vpop.trf.xlu0
        %v1501 = vpop.trf.xlu0
        %v1502 = vpop.trf.xlu0
        %v1503 = vpop.trf.xlu0
        %v1504 = vpop.trf.xlu0
        %v1505 = vrot.slane %v1449, 4
        %v1506 = vsel %vm507, %v1505, %v1385
        %v1508 = vunpack.c.l.s4 1983009808
        %v1509 = vunpack.c.0.s8 %v1508
        %v1510 = vperm.slane %v1506, %v1509
        %v1511 = vrot.slane %v1481, 4
        %v1512 = vsel %vm507, %v1511, %v1417
        %v1514 = vunpack.c.l.s4 1983009808
        %v1515 = vunpack.c.0.s8 %v1514
        %v1516 = vperm.slane %v1512, %v1515
        %v1517 = vrot.slane %v1516, 4
        %v1518 = vsel %vm507, %v1517, %v1510
        %v1520 = vunpack.c.l.s4 1934713408
        %v1521 = vunpack.c.0.s8 %v1520
        %v1522 = vperm.slane %v1518, %v1521
        %v1523 = vrot.slane %v1522, 4
        %v1524 = vsel %vm507, 0, %v1523
        %v1525 = vrot.slane %v1465, 4
        %v1526 = vsel %vm507, %v1525, %v1401
        %v1528 = vunpack.c.l.s4 1983009808
        %v1529 = vunpack.c.0.s8 %v1528
        %v1530 = vperm.slane %v1526, %v1529
        %v1531 = vrot.slane %v1497, 4
        %v1532 = vsel %vm507, %v1531, %v1433
        %v1534 = vunpack.c.l.s4 1983009808
        %v1535 = vunpack.c.0.s8 %v1534
        %v1536 = vperm.slane %v1532, %v1535
        %v1537 = vrot.slane %v1536, 4
        %v1538 = vsel %vm507, %v1537, %v1530
        %v1540 = vunpack.c.l.s4 1934713408
        %v1541 = vunpack.c.0.s8 %v1540
        %v1542 = vperm.slane %v1538, %v1541
        %v1543 = vrot.slane %v1542, 4
        %v1544 = vsel %vm507, 0, %v1543
        %v1547 = vpack.i.b16 %v1542, %v1522
        %v1548 = vshrl.u32 %v1522, 16
        %v1549 = vshrl.u32 %v1542, 16
        %v1550 = vpack.i.b16 %v1549, %v1548
        %v1553 = vpack.i.b16 %v1544, %v1524
        %v1554 = vshrl.u32 %v1524, 16
        %v1555 = vshrl.u32 %v1544, 16
        %v1556 = vpack.i.b16 %v1555, %v1554
        %v1558 = vsel %vm965, %v1547, 0
        %v1561 = vsel %vm965, %v1157, 0
        %1563 = vmatpush.bf16.xpose.msra.mxu0 0
        %1564 = vmatpush.bf16.xpose.msra.mxu0 0
        %1565 = vmatpush.bf16.xpose.msra.mxu0 0
        %1566 = vmatpush.bf16.xpose.msra.mxu0 0
        %1567 = vmatpush.bf16.xpose.msra.mxu0 0
        %1568 = vmatpush.bf16.xpose.msra.mxu0 0
        %1569 = vmatpush.bf16.xpose.msra.mxu0 0
        %1570 = vmatpush.bf16.xpose.msra.mxu0 %v1561
        %1571 = vmatmul.bf16.gmra.mxu0 %v1558
        %v1572 = vpop.f32.mrf.mxu0
        %v1573 = vadd.f32 0.0, %v1572
        %v1574 = vpop.f32.mrf.mxu0
        %1575 = vdwg.mxu0
        %v1577 = vsel %vm965, %v1550, 0
        %v1580 = vsel %vm965, %v1158, 0
        %1582 = vmatpush.bf16.xpose.msra.mxu0 0
        %1583 = vmatpush.bf16.xpose.msra.mxu0 0
        %1584 = vmatpush.bf16.xpose.msra.mxu0 0
        %1585 = vmatpush.bf16.xpose.msra.mxu0 0
        %1586 = vmatpush.bf16.xpose.msra.mxu0 0
        %1587 = vmatpush.bf16.xpose.msra.mxu0 0
        %1588 = vmatpush.bf16.xpose.msra.mxu0 0
        %1589 = vmatpush.bf16.xpose.msra.mxu0 %v1580
        %1590 = vmatmul.bf16.gmra.mxu0 %v1577
        %v1591 = vpop.f32.mrf.mxu0
        %v1592 = vadd.f32 0.0, %v1591
        %v1593 = vpop.f32.mrf.mxu0
        %1594 = vdwg.mxu0
        %v1596 = vsel %vm965, %v1553, 0
        %v1599 = vsel %vm965, %v1159, 0
        %1601 = vmatpush.bf16.xpose.msra.mxu0 0
        %1602 = vmatpush.bf16.xpose.msra.mxu0 0
        %1603 = vmatpush.bf16.xpose.msra.mxu0 0
        %1604 = vmatpush.bf16.xpose.msra.mxu0 0
        %1605 = vmatpush.bf16.xpose.msra.mxu0 0
        %1606 = vmatpush.bf16.xpose.msra.mxu0 0
        %1607 = vmatpush.bf16.xpose.msra.mxu0 0
        %1608 = vmatpush.bf16.xpose.msra.mxu0 %v1599
        %1609 = vmatmul.bf16.gmra.mxu0 %v1596
        %v1610 = vpop.f32.mrf.mxu0
        %v1611 = vadd.f32 0.0, %v1610
        %v1612 = vpop.f32.mrf.mxu0
        %1613 = vdwg.mxu0
        %v1615 = vsel %vm965, %v1556, 0
        %v1618 = vsel %vm965, %v1160, 0
        %1620 = vmatpush.bf16.xpose.msra.mxu0 0
        %1621 = vmatpush.bf16.xpose.msra.mxu0 0
        %1622 = vmatpush.bf16.xpose.msra.mxu0 0
        %1623 = vmatpush.bf16.xpose.msra.mxu0 0
        %1624 = vmatpush.bf16.xpose.msra.mxu0 0
        %1625 = vmatpush.bf16.xpose.msra.mxu0 0
        %1626 = vmatpush.bf16.xpose.msra.mxu0 0
        %1627 = vmatpush.bf16.xpose.msra.mxu0 %v1618
        %1628 = vmatmul.bf16.gmra.mxu0 %v1615
        %v1629 = vpop.f32.mrf.mxu0
        %v1630 = vadd.f32 0.0, %v1629
        %v1631 = vpop.f32.mrf.mxu0
        %1632 = vdwg.mxu0
        %1633 = vxpose.xlu0.b32.start [1/16] %v1573, 128
        %1634 = vxpose.xlu0.b32.cont [2/16] 0.0, 128
        %1635 = vxpose.xlu0.b32.cont [3/16] 0.0, 128
        %1636 = vxpose.xlu0.b32.cont [4/16] 0.0, 128
        %1637 = vxpose.xlu0.b32.cont [5/16] 0.0, 128
        %1638 = vxpose.xlu0.b32.cont [6/16] 0.0, 128
        %1639 = vxpose.xlu0.b32.cont [7/16] 0.0, 128
        %1640 = vxpose.xlu0.b32.cont [8/16] 0.0, 128
        %1641 = vxpose.xlu0.b32.cont [9/16] 0.0, 128
        %1642 = vxpose.xlu0.b32.cont [10/16] 0.0, 128
        %1643 = vxpose.xlu0.b32.cont [11/16] 0.0, 128
        %1644 = vxpose.xlu0.b32.cont [12/16] 0.0, 128
        %1645 = vxpose.xlu0.b32.cont [13/16] 0.0, 128
        %1646 = vxpose.xlu0.b32.cont [14/16] 0.0, 128
        %1647 = vxpose.xlu0.b32.cont [15/16] 0.0, 128
        %1648 = vxpose.xlu0.b32.end [16/16] 0.0, 128
        %v1649 = vpop.trf.xlu0
        %v1650 = vpop.trf.xlu0
        %v1651 = vpop.trf.xlu0
        %v1652 = vpop.trf.xlu0
        %v1653 = vpop.trf.xlu0
        %v1654 = vpop.trf.xlu0
        %v1655 = vpop.trf.xlu0
        %v1656 = vpop.trf.xlu0
        %v1657 = vpop.trf.xlu0
        %v1658 = vpop.trf.xlu0
        %v1659 = vpop.trf.xlu0
        %v1660 = vpop.trf.xlu0
        %v1661 = vpop.trf.xlu0
        %v1662 = vpop.trf.xlu0
        %v1663 = vpop.trf.xlu0
        %v1664 = vpop.trf.xlu0
        %1665 = vxpose.xlu0.b32.start [1/16] %v1592, 128
        %1666 = vxpose.xlu0.b32.cont [2/16] 0.0, 128
        %1667 = vxpose.xlu0.b32.cont [3/16] 0.0, 128
        %1668 = vxpose.xlu0.b32.cont [4/16] 0.0, 128
        %1669 = vxpose.xlu0.b32.cont [5/16] 0.0, 128
        %1670 = vxpose.xlu0.b32.cont [6/16] 0.0, 128
        %1671 = vxpose.xlu0.b32.cont [7/16] 0.0, 128
        %1672 = vxpose.xlu0.b32.cont [8/16] 0.0, 128
        %1673 = vxpose.xlu0.b32.cont [9/16] 0.0, 128
        %1674 = vxpose.xlu0.b32.cont [10/16] 0.0, 128
        %1675 = vxpose.xlu0.b32.cont [11/16] 0.0, 128
        %1676 = vxpose.xlu0.b32.cont [12/16] 0.0, 128
        %1677 = vxpose.xlu0.b32.cont [13/16] 0.0, 128
        %1678 = vxpose.xlu0.b32.cont [14/16] 0.0, 128
        %1679 = vxpose.xlu0.b32.cont [15/16] 0.0, 128
        %1680 = vxpose.xlu0.b32.end [16/16] 0.0, 128
        %v1681 = vpop.trf.xlu0
        %v1682 = vpop.trf.xlu0
        %v1683 = vpop.trf.xlu0
        %v1684 = vpop.trf.xlu0
        %v1685 = vpop.trf.xlu0
        %v1686 = vpop.trf.xlu0
        %v1687 = vpop.trf.xlu0
        %v1688 = vpop.trf.xlu0
        %v1689 = vpop.trf.xlu0
        %v1690 = vpop.trf.xlu0
        %v1691 = vpop.trf.xlu0
        %v1692 = vpop.trf.xlu0
        %v1693 = vpop.trf.xlu0
        %v1694 = vpop.trf.xlu0
        %v1695 = vpop.trf.xlu0
        %v1696 = vpop.trf.xlu0
        %1697 = vxpose.xlu0.b32.start [1/16] %v1611, 128
        %1698 = vxpose.xlu0.b32.cont [2/16] 0.0, 128
        %1699 = vxpose.xlu0.b32.cont [3/16] 0.0, 128
        %1700 = vxpose.xlu0.b32.cont [4/16] 0.0, 128
        %1701 = vxpose.xlu0.b32.cont [5/16] 0.0, 128
        %1702 = vxpose.xlu0.b32.cont [6/16] 0.0, 128
        %1703 = vxpose.xlu0.b32.cont [7/16] 0.0, 128
        %1704 = vxpose.xlu0.b32.cont [8/16] 0.0, 128
        %1705 = vxpose.xlu0.b32.cont [9/16] 0.0, 128
        %1706 = vxpose.xlu0.b32.cont [10/16] 0.0, 128
        %1707 = vxpose.xlu0.b32.cont [11/16] 0.0, 128
        %1708 = vxpose.xlu0.b32.cont [12/16] 0.0, 128
        %1709 = vxpose.xlu0.b32.cont [13/16] 0.0, 128
        %1710 = vxpose.xlu0.b32.cont [14/16] 0.0, 128
        %1711 = vxpose.xlu0.b32.cont [15/16] 0.0, 128
        %1712 = vxpose.xlu0.b32.end [16/16] 0.0, 128
        %v1713 = vpop.trf.xlu0
        %v1714 = vpop.trf.xlu0
        %v1715 = vpop.trf.xlu0
        %v1716 = vpop.trf.xlu0
        %v1717 = vpop.trf.xlu0
        %v1718 = vpop.trf.xlu0
        %v1719 = vpop.trf.xlu0
        %v1720 = vpop.trf.xlu0
        %v1721 = vpop.trf.xlu0
        %v1722 = vpop.trf.xlu0
        %v1723 = vpop.trf.xlu0
        %v1724 = vpop.trf.xlu0
        %v1725 = vpop.trf.xlu0
        %v1726 = vpop.trf.xlu0
        %v1727 = vpop.trf.xlu0
        %v1728 = vpop.trf.xlu0
        %1729 = vxpose.xlu0.b32.start [1/16] %v1630, 128
        %1730 = vxpose.xlu0.b32.cont [2/16] 0.0, 128
        %1731 = vxpose.xlu0.b32.cont [3/16] 0.0, 128
        %1732 = vxpose.xlu0.b32.cont [4/16] 0.0, 128
        %1733 = vxpose.xlu0.b32.cont [5/16] 0.0, 128
        %1734 = vxpose.xlu0.b32.cont [6/16] 0.0, 128
        %1735 = vxpose.xlu0.b32.cont [7/16] 0.0, 128
        %1736 = vxpose.xlu0.b32.cont [8/16] 0.0, 128
        %1737 = vxpose.xlu0.b32.cont [9/16] 0.0, 128
        %1738 = vxpose.xlu0.b32.cont [10/16] 0.0, 128
        %1739 = vxpose.xlu0.b32.cont [11/16] 0.0, 128
        %1740 = vxpose.xlu0.b32.cont [12/16] 0.0, 128
        %1741 = vxpose.xlu0.b32.cont [13/16] 0.0, 128
        %1742 = vxpose.xlu0.b32.cont [14/16] 0.0, 128
        %1743 = vxpose.xlu0.b32.cont [15/16] 0.0, 128
        %1744 = vxpose.xlu0.b32.end [16/16] 0.0, 128
        %v1745 = vpop.trf.xlu0
        %v1746 = vpop.trf.xlu0
        %v1747 = vpop.trf.xlu0
        %v1748 = vpop.trf.xlu0
        %v1749 = vpop.trf.xlu0
        %v1750 = vpop.trf.xlu0
        %v1751 = vpop.trf.xlu0
        %v1752 = vpop.trf.xlu0
        %v1753 = vpop.trf.xlu0
        %v1754 = vpop.trf.xlu0
        %v1755 = vpop.trf.xlu0
        %v1756 = vpop.trf.xlu0
        %v1757 = vpop.trf.xlu0
        %v1758 = vpop.trf.xlu0
        %v1759 = vpop.trf.xlu0
        %v1760 = vpop.trf.xlu0
        %v1761 = vrot.slane %v1713, 4
        %vm1762 = vcmask 1047556
        %v1763 = vsel %vm1762, %v1761, %v1649
        %v1764 = vrot.slane %v1649, 4
        %v1765 = vsel %vm1762, %v1713, %v1764
        %v1767 = vunpack.c.l.s4 1983009808
        %v1768 = vunpack.c.0.s8 %v1767
        %v1769 = vperm.slane %v1763, %v1768
        %v1771 = vunpack.c.l.s4 1983009808
        %v1772 = vunpack.c.0.s8 %v1771
        %v1773 = vperm.slane %v1765, %v1772
        %v1774 = vrot.slane %v1745, 4
        %v1775 = vsel %vm1762, %v1774, %v1681
        %v1776 = vrot.slane %v1681, 4
        %v1777 = vsel %vm1762, %v1745, %v1776
        %v1779 = vunpack.c.l.s4 1983009808
        %v1780 = vunpack.c.0.s8 %v1779
        %v1781 = vperm.slane %v1775, %v1780
        %v1783 = vunpack.c.l.s4 1983009808
        %v1784 = vunpack.c.0.s8 %v1783
        %v1785 = vperm.slane %v1777, %v1784
        %v1786 = vrot.slane %v1781, 4
        %v1787 = vsel %vm1762, %v1786, %v1769
        %v1788 = vrot.slane %v1769, 4
        %v1789 = vsel %vm1762, %v1781, %v1788
        %v1791 = vunpack.c.l.s4 1934713408
        %v1792 = vunpack.c.0.s8 %v1791
        %v1793 = vperm.slane %v1787, %v1792
        %v1795 = vunpack.c.l.s4 1934713408
        %v1796 = vunpack.c.0.s8 %v1795
        %v1797 = vperm.slane %v1789, %v1796
        %v1798 = vrot.slane %v1785, 4
        %v1799 = vsel %vm1762, %v1798, %v1773
        %v1800 = vrot.slane %v1773, 4
        %v1801 = vsel %vm1762, %v1785, %v1800
        %v1803 = vunpack.c.l.s4 1934713408
        %v1804 = vunpack.c.0.s8 %v1803
        %v1805 = vperm.slane %v1799, %v1804
        %v1807 = vunpack.c.l.s4 1934713408
        %v1808 = vunpack.c.0.s8 %v1807
        %v1809 = vperm.slane %v1801, %v1808
        %v1810 = vrot.slane %v1793, 4
        %v1811 = vsel %vm1762, 0.0, %v1810
        %v1812 = vrot.slane %v1797, 4
        %v1813 = vsel %vm1762, 0.0, %v1812
        %v1814 = vrot.slane %v1805, 4
        %v1815 = vsel %vm1762, 0.0, %v1814
        %v1816 = vrot.slane %v1809, 4
        %v1817 = vsel %vm1762, 0.0, %v1816
        %v1818 = vsel %vm1762, %v1812, %v1793
        %v1820 = vunpack.c.l.s4 1983009808
        %v1821 = vunpack.c.0.s8 %v1820
        %v1822 = vperm.slane %v1818, %v1821
        %v1823 = vrot.slane %v1813, 4
        %v1824 = vsel %vm1762, %v1823, %v1811
        %v1826 = vunpack.c.l.s4 1983009808
        %v1827 = vunpack.c.0.s8 %v1826
        %v1828 = vperm.slane %v1824, %v1827
        %v1829 = vsel %vm1762, %v1816, %v1805
        %v1831 = vunpack.c.l.s4 1983009808
        %v1832 = vunpack.c.0.s8 %v1831
        %v1833 = vperm.slane %v1829, %v1832
        %v1834 = vrot.slane %v1817, 4
        %v1835 = vsel %vm1762, %v1834, %v1815
        %v1837 = vunpack.c.l.s4 1983009808
        %v1838 = vunpack.c.0.s8 %v1837
        %v1839 = vperm.slane %v1835, %v1838
        %v1840 = vrot.slane %v1828, 4
        %v1841 = vsel %vm1762, %v1840, %v1822
        %v1842 = vrot.slane %v1822, 4
        %v1843 = vsel %vm1762, %v1828, %v1842
        %v1845 = vunpack.c.l.s4 1934713408
        %v1846 = vunpack.c.0.s8 %v1845
        %v1847 = vperm.slane %v1841, %v1846
        %v1849 = vunpack.c.l.s4 1934713408
        %v1850 = vunpack.c.0.s8 %v1849
        %v1851 = vperm.slane %v1843, %v1850
        %v1852 = vrot.slane %v1839, 4
        %v1853 = vsel %vm1762, %v1852, %v1833
        %v1854 = vrot.slane %v1833, 4
        %v1855 = vsel %vm1762, %v1839, %v1854
        %v1857 = vunpack.c.l.s4 1934713408
        %v1858 = vunpack.c.0.s8 %v1857
        %v1859 = vperm.slane %v1853, %v1858
        %v1861 = vunpack.c.l.s4 1934713408
        %v1862 = vunpack.c.0.s8 %v1861
        %v1863 = vperm.slane %v1855, %v1862
        %v1864 = vrot.slane %v1859, 4
        %v1865 = vsel %vm1762, %v1864, %v1847
        %v1866 = vrot.slane %v1847, 4
        %v1867 = vsel %vm1762, %v1859, %v1866
        %v1868 = vrot.slane %v1863, 4
        %v1869 = vsel %vm1762, %v1868, %v1851
        %v1870 = vrot.slane %v1851, 4
        %v1871 = vsel %vm1762, %v1863, %v1870
        %1873 = vrot.lane.b32.xlu0 %v1867, 8
        %v1874 = vpop.permute.xlu0 %1873
        %1877 = vrot.lane.b32.xlu0 %v1869, 16
        %v1878 = vpop.permute.xlu0 %1877
        %1881 = vrot.lane.b32.xlu0 %v1871, 24
        %v1882 = vpop.permute.xlu0 %1881
        %v1884 = vsel %vm965, %v1865, %v1874
        %vm1885 = vcmask 130048
        %v1886 = vsel %vm1885, %v1884, %v1878
        %vm1887 = vcmask 195584
        %v1888 = vsel %vm1887, %v1886, %v1882
        %v1889 = vpack.c.bf16 %v1888, %v1888
        %v1891 = vperm.slane %v505, 0
        %v1897 = vunpack.c.l.b16 %v501
        %v1898 = vunpack.c.l.b16 %v502
        %v1899 = vunpack.c.l.b16 %v503
        %v1900 = vunpack.c.l.b16 %v504
        %v1901 = vpack.c.b16 %v1898, %v1897
        %v1902 = vpack.c.b16 %v1900, %v1899
        %vm1905 = vcmask 261120
        %v1907 = vsel %vm1905, %v1889, 0
        %1909 = vmatpush.bf16.msra.mxu0 0
        %1910 = vmatpush.bf16.msra.mxu0 0
        %1911 = vmatpush.bf16.msra.mxu0 0
        %1912 = vmatpush.bf16.msra.mxu0 0
        %1913 = vmatpush.bf16.msra.mxu0 0
        %1914 = vmatpush.bf16.msra.mxu0 0
        %1915 = vmatpush.bf16.msra.mxu0 %v1902
        %1916 = vmatpush.bf16.msra.mxu0 %v1901
        %1917 = vmatmul.bf16.gmra.mxu0 %v1907
        %v1918 = vpop.f32.mrf.mxu0
        %v1919 = vadd.f32 %v1891, %v1918
        %v1920 = vpop.f32.mrf.mxu0
        %1921 = vdwg.mxu0
        %1922 = vst.msk [vmem:[%s475] sm:$0xff] %vm1905, %v1919
        %p1923 = scmp.lt.s32.totalorder %s16, 1
        %s1924 = scalar_select %p1923, %s16, 1
        %s1925 = smul.addr %s1924, 8
        %s1926 = scalar_lea.vmem %s5, %s1925
        // Predicated region
        $region164: #{vit_attention_forward.3} parent=150 // pred_check
          %p1927 = pneg %p154
        $region165: #{vit_attention_forward.3} parent=150 // pred_check_branch
          %1929 = sbr.rel (%p1927) target = $region167
        $region166: #{vit_attention_forward.3} parent=150 // pred_region
          _
        $region167: #{vit_attention_forward.3} parent=150 // pred_fallthru
          _
      $region151: #{vit_attention_forward.3} parent=5 // pred_fallthru
        _
      %p1930 = scmp.le.s32.totalorder 2, %s11
      // Predicated region
      $region168: #{vit_attention_forward.3} parent=5 // pred_check
        %p1931 = pneg %p1930
      $region169: #{vit_attention_forward.3} parent=5 // pred_check_branch
        %1933 = sbr.rel (%p1931) target = $region171
      $region170: #{vit_attention_forward.3} parent=5 // pred_region
        %s1934 = ssub.s32 %s11, 2
        // Predicated region
        $region172: #{vit_attention_forward.3} parent=170 // pred_check
          %p1935 = pneg %p160
        $region173: #{vit_attention_forward.3} parent=170 // pred_check_branch
          %1937 = sbr.rel (%p1935) target = $region175
        $region174: #{vit_attention_forward.3} parent=170 // pred_region
          %p1938 = scmp.lt.s32.totalorder %s17, 1
          %s1939 = scalar_select %p1938, %s17, 1
          %s1940 = smul.addr %s1939, 8
          %s1941 = scalar_lea.vmem %s5, %s1940
        $region175: #{vit_attention_forward.3} parent=170 // pred_fallthru
          _
      $region171: #{vit_attention_forward.3} parent=5 // pred_fallthru
        _
    $region6: #{vit_attention_forward.3} parent=1 // loop_footer
      %s15 = sadd.s32 1, %s11
    $region7: #{vit_attention_forward.3} parent=1 // loop_footer_branch
      %10 = sbr.rel target = $region3
    $region8: #{vit_attention_forward.3} parent=1 // loop_exit
      _

</llo_original>
